<compile_context>
chip_gen: v7x
topology: tpu7x:2x2x1
jax: 0.10.0
libtpu: 0.0.40
codegen_flags: <defaults>
</compile_context>

<pallas_src>
import jax
import jax.numpy as jnp
from jax import lax
from jax.experimental import pallas as pl
from jax.experimental.pallas import tpu as pltpu

# ----------------------------- configuration --------------------------------
B = 2            # batch
C = 3            # image channels
IMG = 16         # image spatial size
PATCH = 8        # patch size -> 4 soft prompts per image
N_PATCH = (IMG // PATCH) ** 2          # 4
PATCH_DIM = C * PATCH * PATCH          # 192
ALIGN_DIM = 32                         # image_to_soft_prompt_model.align_dim
HIDDEN = 64                            # model.config.hidden_size (synthetic)
FF = 128                               # MLP intermediate
VOCAB = 256
N_HEADS = 2
HEAD_DIM = HIDDEN // N_HEADS
T_PROMPT = 6                           # len(manual_prompt_ids)
T_CAP = 8                              # caption length
T_TOT = T_PROMPT + T_CAP               # 14
PAD_TOKEN_ID = 0
EPS = 1e-6

# 8-aligned in-kernel sequence layout: soft prompts in rows [0, N_PATCH), zero
# pad rows up to TOK_OFF, tokens in rows [TOK_OFF, TOK_OFF + T_TOT), zero pad up
# to S_PAD.  Pad rows are masked out as attention keys, so real-row hidden
# states equal the contiguous layout, while every sublane slice/store is
# 8-aligned (no retiling copy from a seq-dim concat).
TOK_OFF = ((N_PATCH + 7) // 8) * 8                 # 8
S_PAD = ((TOK_OFF + T_TOT + 7) // 8) * 8           # 24

MANUAL_PROMPT_IDS = jnp.array([[1, 45, 76, 94, 140, 29]], dtype=jnp.int32)

# -------------------- packed bf16 weight slab layout --------------------------
# Every block sits at an 8-aligned row offset, lane offset 0, lane-padded to 256.
PACK_LANES = 256
_ROWS = (PATCH_DIM,            # w_img
         ALIGN_DIM,            # w_proj
         VOCAB,                # wte
         N_HEADS * HIDDEN,     # wq  (per-head (HIDDEN, HEAD_DIM) blocks, stacked)
         N_HEADS * HIDDEN,     # wk
         N_HEADS * HIDDEN,     # wv
         HIDDEN,               # wo
         HIDDEN,               # w13 (gate|up fused, 2*FF lanes)
         FF,                   # w2
         HIDDEN)               # w_lm
_offs = [0]
for _r in _ROWS:
    _offs.append(_offs[-1] + _r)
(W_IMG_OFF, W_PROJ_OFF, WTE_OFF, WQ_OFF, WK_OFF, WV_OFF,
 WO_OFF, W13_OFF, W2_OFF, W_LM_OFF, W_ROWS) = _offs
assert all(o % 8 == 0 for o in _offs)


# --------------------------- fully fused forward ------------------------------
def _fused_forward_kernel(patches_ref, ids_ref, wbuf_ref, bias_ref,
                          out_ref, x_sc):
    f32, bf16 = jnp.float32, jnp.bfloat16

    def w(off, rows, cols):
        # Row offsets are multiples of 8 and every lane slice starts at lane 0,
        # so weight loads never need cross-lane / cross-sublane shuffles.
        return wbuf_ref[off:off + rows, :cols]

    def rms(v):
        # RMSNorm; the gain is folded into the downstream weights at init.
        return v * lax.rsqrt(jnp.mean(v * v, axis=-1, keepdims=True) + EPS)

    # ---- image_to_soft_prompt_model + soft_prompts_proj (two fused linears) --
    # TODO(synk): the real image_to_soft_prompt_model is an injected opaque
    # module; it is replaced by a deterministic patch-embedding linear.
    patches = patches_ref[0].astype(bf16)                            # (P, 192)
    s1 = jnp.dot(patches, w(W_IMG_OFF, PATCH_DIM, ALIGN_DIM),
                 preferred_element_type=f32) + bias_ref[0:1, :ALIGN_DIM]
    soft = jnp.dot(s1.astype(bf16), w(W_PROJ_OFF, ALIGN_DIM, HIDDEN),
                   preferred_element_type=f32) + bias_ref[1:2, :HIDDEN]

    # ---- wte(tokens): one-hot MXU matmul (VOCAB=256, lane-dense) -------------
    ids = ids_ref[0]                                                 # (T, 1) i32
    viota_v = lax.broadcasted_iota(jnp.int32, (T_TOT, VOCAB), 1)
    # bool -> f32 -> bf16 (no f32 select over the one-hot tensor)
    onehot = (viota_v == ids).astype(f32).astype(bf16)               # (T, V)
    tok = jnp.dot(onehot, w(WTE_OFF, VOCAB, HIDDEN),
                  preferred_element_type=f32)                        # (T, H)

    # ---- DynamicSoftEmbedding concat -> 8-aligned scratch writes -------------
    x_sc[...] = jnp.zeros_like(x_sc)
    x_sc[0:N_PATCH, :] = soft
    x_sc[TOK_OFF:TOK_OFF + T_TOT, :] = tok
    x = x_sc[...]                                                    # (S_PAD, H)

    # ---- additive causal + key-validity bias, built once ---------------------
    row = lax.broadcasted_iota(jnp.int32, (S_PAD, S_PAD), 0)
    col = lax.broadcasted_iota(jnp.int32, (S_PAD, S_PAD), 1)
    key_ok = (col < N_PATCH) | ((col >= TOK_OFF) & (col < TOK_OFF + T_TOT))
    bias = jnp.where((col <= row) & key_ok, 0.0, -1e30)              # (S, S)

    # ---- llama-style decoder block --------------------------------------------
    h1 = rms(x).astype(bf16)
    attn = jnp.zeros((S_PAD, HIDDEN), f32)
    for h in range(N_HEADS):   # static unroll; per-head weights pre-split host-side
        qh = jnp.dot(h1, w(WQ_OFF + h * HIDDEN, HIDDEN, HEAD_DIM),
                     preferred_element_type=f32).astype(bf16)   # scale folded in
        kh = jnp.dot(h1, w(WK_OFF + h * HIDDEN, HIDDEN, HEAD_DIM),
                     preferred_element_type=f32).astype(bf16)
        vh = jnp.dot(h1, w(WV_OFF + h * HIDDEN, HIDDEN, HEAD_DIM),
                     preferred_element_type=f32).astype(bf16)
        s = jnp.einsum("qd,kd->qk", qh, kh,
                       preferred_element_type=f32) + bias
        m = jnp.max(s, axis=-1, keepdims=True)
        e = jnp.exp(s - m)
        p = e / jnp.sum(e, axis=-1, keepdims=True)                  # exact softmax
        ctx = jnp.einsum("qk,kd->qd", p.astype(bf16), vh,
                         preferred_element_type=f32).astype(bf16)
        # per-head slice of wo is on 8-aligned ROWS (offsets 0 / 32), lanes at 0
        attn = attn + jnp.dot(
            ctx,
            wbuf_ref[WO_OFF + h * HEAD_DIM:WO_OFF + (h + 1) * HEAD_DIM, :HIDDEN],
            preferred_element_type=f32)

    x1 = x + attn
    h2 = rms(x1).astype(bf16)
    gu = jnp.dot(h2, w(W13_OFF, HIDDEN, 2 * FF), preferred_element_type=f32)
    gate, up = gu[:, :FF], gu[:, FF:]                    # 128-aligned lane split
    ff = jnp.dot((jax.nn.silu(gate) * up).astype(bf16),
                 w(W2_OFF, FF, HIDDEN), preferred_element_type=f32)
    x2 = x1 + ff

    # ---- final RMSNorm + LM head over the loss rows only ----------------------
    # logits[:, -T:][:, :-1] == padded rows [TOK_OFF, TOK_OFF+T-2]  (8-aligned)
    hsel = x2[TOK_OFF:TOK_OFF + T_TOT - 1, :]                        # (T-1, H)
    logits = jnp.dot(rms(hsel).astype(bf16), w(W_LM_OFF, HIDDEN, VOCAB),
                     preferred_element_type=f32)                     # (T-1, V)

    # ---- shifted ignore_index=-100 CE: per-program partial sums ---------------
    labels = jnp.where(ids == PAD_TOKEN_ID, -100, ids)               # (T, 1)
    shift_labels = labels[1:, :]                                     # (T-1, 1)
    mx = jnp.max(logits, axis=-1, keepdims=True)
    lse = mx + jnp.log(jnp.sum(jnp.exp(logits - mx), axis=-1, keepdims=True))
    viota_l = lax.broadcasted_iota(jnp.int32, (T_TOT - 1, VOCAB), 1)
    tgt = jnp.sum(jnp.where(viota_l == shift_labels, logits, 0.0),
                  axis=-1, keepdims=True)
    valid = shift_labels != -100
    per_tok = jnp.where(valid, lse - tgt, 0.0)                       # (T-1, 1)
    loss_sum = jnp.sum(per_tok, keepdims=True)                       # (1, 1)
    cnt = jnp.sum(valid.astype(f32), keepdims=True)                  # (1, 1)

    # lane-dense (8,128) output tile: row 0 = loss_sum, row 1 = valid count
    r8 = lax.broadcasted_iota(jnp.int32, (8, 128), 0)
    out_ref[0] = jnp.where(r8 == 0, loss_sum, jnp.where(r8 == 1, cnt, 0.0))


# ------------------------------ parameters -----------------------------------
def init_params(key):
    ks = jax.random.split(key, 11)
    s = 0.02
    f32 = jnp.float32
    w_img = s * jax.random.normal(ks[0], (PATCH_DIM, ALIGN_DIM), f32)
    w_proj = s * jax.random.normal(ks[1], (ALIGN_DIM, HIDDEN), f32)
    wte = s * jax.random.normal(ks[2], (VOCAB, HIDDEN), f32)
    wq = s * jax.random.normal(ks[3], (HIDDEN, HIDDEN), f32)
    wk = s * jax.random.normal(ks[4], (HIDDEN, HIDDEN), f32)
    wv = s * jax.random.normal(ks[5], (HIDDEN, HIDDEN), f32)
    wo = s * jax.random.normal(ks[6], (HIDDEN, HIDDEN), f32)
    w1 = s * jax.random.normal(ks[7], (HIDDEN, FF), f32)
    w3 = s * jax.random.normal(ks[8], (HIDDEN, FF), f32)
    w2 = s * jax.random.normal(ks[9], (FF, HIDDEN), f32)
    w_lm = s * jax.random.normal(ks[10], (HIDDEN, VOCAB), f32)
    ln1 = jnp.ones((HIDDEN, 1), f32)
    ln2 = jnp.ones((HIDDEN, 1), f32)
    ln_f = jnp.ones((HIDDEN, 1), f32)
    b_img = jnp.zeros((ALIGN_DIM,), f32)
    b_proj = jnp.zeros((HIDDEN,), f32)

    # Fold RMSNorm gains ((x*g) @ W == x @ (g[:,None]*W)) and the attention
    # 1/sqrt(head_dim) scale into the weights; gains are ones so it is a no-op
    # numerically, but keeps the in-kernel rmsnorm gain-free.
    scale = 1.0 / (HEAD_DIM ** 0.5)
    wq = (ln1 * wq) * scale
    wk = ln1 * wk
    wv = ln1 * wv
    w13 = ln2 * jnp.concatenate([w1, w3], axis=1)          # (H, 2FF)
    w_lm = ln_f * w_lm

    # Pre-split q/k/v per head and stack the (HIDDEN, HEAD_DIM) blocks along the
    # row axis so every in-kernel weight slice starts at lane 0 / 8-aligned rows.
    def split_heads(wm):
        return jnp.concatenate(
            [wm[:, h * HEAD_DIM:(h + 1) * HEAD_DIM] for h in range(N_HEADS)],
            axis=0)

    def pad_lanes(m):
        return jnp.pad(m, ((0, 0), (0, PACK_LANES - m.shape[1])))

    blocks = [w_img, w_proj, wte, split_heads(wq), split_heads(wk),
              split_heads(wv), wo, w13, w2, w_lm]
    wbuf = jnp.concatenate([pad_lanes(m) for m in blocks],
                           axis=0).astype(jnp.bfloat16)     # (W_ROWS, 256)
    assert wbuf.shape == (W_ROWS, PACK_LANES)

    bias = jnp.zeros((8, 128), f32)
    bias = bias.at[0, :ALIGN_DIM].set(b_img)                # image-embed bias
    bias = bias.at[1, :HIDDEN].set(b_proj)                  # soft_prompts_proj bias
    return {"wbuf": wbuf, "bias": bias}


# ------------------------------ forward pass ----------------------------------
def soft_prompt_image_caption_forward(params, imgs, caption_token_ids):
    """imgs: (B, C, H, W) NCHW float32; caption_token_ids: (B, T_CAP) int32."""
    Bk = imgs.shape[0]

    # patchify (pure layout glue; all hot-path compute is inside one kernel)
    patches = imgs.reshape(Bk, C, IMG // PATCH, PATCH, IMG // PATCH, PATCH)
    patches = patches.transpose(0, 2, 4, 1, 3, 5).reshape(Bk, N_PATCH, PATCH_DIM)

    # prompt template repeat + concat with caption ids (tiny int32 glue)
    prompt_ids = jnp.tile(MANUAL_PROMPT_IDS, (Bk, 1))
    input_ids = jnp.concatenate(
        [prompt_ids, caption_token_ids.astype(jnp.int32)], axis=1)    # (B, T)
    ids3 = input_ids[:, :, None]                                      # (B, T, 1)

    out = pl.pallas_call(
        _fused_forward_kernel,
        out_shape=jax.ShapeDtypeStruct((Bk, 8, 128), jnp.float32),
        grid=(Bk,),                      # batch-parallel: uses both TCs on v7x;
        in_specs=[                       # ~0.35us extra grid step on v5e/v6e
            pl.BlockSpec((1, N_PATCH, PATCH_DIM), lambda b: (b, 0, 0)),
            pl.BlockSpec((1, T_TOT, 1), lambda b: (b, 0, 0)),
            pl.BlockSpec((W_ROWS, PACK_LANES), lambda b: (0, 0)),   # resident
            pl.BlockSpec((8, 128), lambda b: (0, 0)),               # resident
        ],
        out_specs=pl.BlockSpec((1, 8, 128), lambda b: (b, 0, 0)),
        scratch_shapes=[pltpu.VMEM((S_PAD, HIDDEN), jnp.float32)],
        compiler_params=pltpu.CompilerParams(
            dimension_semantics=("parallel",)),
    )(patches.astype(jnp.float32), ids3, params["wbuf"], params["bias"])

    # CE mean over all valid tokens of the whole batch (matches nn.CrossEntropyLoss)
    loss_sum = jnp.sum(out[:, 0, 0])
    cnt = jnp.sum(out[:, 1, 0])
    return loss_sum / jnp.maximum(cnt, 1.0)   # guard: all-pad batch


# --------------------------------- main ---------------------------------------
if __name__ == "__main__":
    params = init_params(jax.random.PRNGKey(0))
    k_img, k_cap = jax.random.split(jax.random.PRNGKey(0))
    imgs = jax.random.normal(k_img, (B, C, IMG, IMG), dtype=jnp.float32)
    caption_token_ids = jax.random.randint(k_cap, (B, T_CAP), 2, VOCAB,
                                           dtype=jnp.int32)
    # add some pad tokens so ignore_index=-100 masking is exercised
    caption_token_ids = caption_token_ids.at[0, -2:].set(PAD_TOKEN_ID)

    fwd = jax.jit(soft_prompt_image_caption_forward)
    loss = jax.block_until_ready(fwd(params, imgs, caption_token_ids))
    assert bool(jnp.isfinite(loss)), "loss is not finite"
    print("KERNEL_OK")
</pallas_src>

<mosaic_0001>
module attributes {stable_mosaic.version = 11 : i64} {
  func.func @_fused_forward_kernel(%arg0: i32, %arg1: memref<1x4x192xf32, #tpu.memory_space<vmem>>, %arg2: memref<1x14x1xi32, #tpu.memory_space<vmem>>, %arg3: memref<1184x256xbf16, #tpu.memory_space<vmem>>, %arg4: memref<8x128xf32, #tpu.memory_space<vmem>>, %arg5: memref<1x8x128xf32, #tpu.memory_space<vmem>>, %arg6: memref<24x64xf32, #tpu.memory_space<vmem>>) attributes {dimension_semantics = [#tpu.dimension_semantics<parallel>], iteration_bounds = array<i64: 2>, scalar_prefetch = 0 : i64, scratch_operands = 1 : i64, tpu.core_type = #tpu.core_type<tc>, window_params = [{transform_indices = @transform_0, window_bounds = array<i64: 1, 4, 192>}, {transform_indices = @transform_1, window_bounds = array<i64: 1, 14, 1>}, {pipeline_mode = #tpu.pipeline_mode<synchronous>, transform_indices = @transform_2, window_bounds = array<i64: 1184, 256>}, {pipeline_mode = #tpu.pipeline_mode<synchronous>, transform_indices = @transform_3, window_bounds = array<i64: 8, 128>}, {transform_indices = @transform_4, window_bounds = array<i64: 1, 8, 128>}]} {
    %c0 = arith.constant 0 : index
    %c0_0 = arith.constant 0 : index
    %c0_1 = arith.constant 0 : index
    %0 = vector.load %arg1[%c0, %c0_0, %c0_1] : memref<1x4x192xf32, #tpu.memory_space<vmem>>, vector<1x4x192xf32>
    %1 = vector.shape_cast %0 : vector<1x4x192xf32> to vector<4x192xf32>
    %2 = arith.truncf %1 : vector<4x192xf32> to vector<4x192xbf16>
    %c0_2 = arith.constant 0 : index
    %c0_3 = arith.constant 0 : index
    %3 = vector.load %arg3[%c0_2, %c0_3] : memref<1184x256xbf16, #tpu.memory_space<vmem>>, vector<192x32xbf16>
    %cst = arith.constant dense<0.000000e+00> : vector<4x32xf32>
    %4 = tpu.matmul %2, %3, %cst {dimension_numbers = #tpu.dot_dimension_numbers<[1], [0], [0], [1], [0, 0, 1, 1], [], []>} : vector<4x192xbf16>, vector<192x32xbf16>, vector<4x32xf32> -> vector<4x32xf32>
    %c0_4 = arith.constant 0 : index
    %c0_5 = arith.constant 0 : index
    %5 = vector.load %arg4[%c0_4, %c0_5] : memref<8x128xf32, #tpu.memory_space<vmem>>, vector<1x32xf32>
    %6 = vector.broadcast %5 : vector<1x32xf32> to vector<4x32xf32>
    %7 = arith.addf %4, %6 : vector<4x32xf32>
    %8 = arith.truncf %7 : vector<4x32xf32> to vector<4x32xbf16>
    %c192 = arith.constant 192 : index
    %c0_6 = arith.constant 0 : index
    %9 = vector.load %arg3[%c192, %c0_6] : memref<1184x256xbf16, #tpu.memory_space<vmem>>, vector<32x64xbf16>
    %cst_7 = arith.constant dense<0.000000e+00> : vector<4x64xf32>
    %10 = tpu.matmul %8, %9, %cst_7 {dimension_numbers = #tpu.dot_dimension_numbers<[1], [0], [0], [1], [0, 0, 1, 1], [], []>} : vector<4x32xbf16>, vector<32x64xbf16>, vector<4x64xf32> -> vector<4x64xf32>
    %c1 = arith.constant 1 : index
    %c0_8 = arith.constant 0 : index
    %11 = vector.load %arg4[%c1, %c0_8] : memref<8x128xf32, #tpu.memory_space<vmem>>, vector<1x64xf32>
    %12 = vector.broadcast %11 : vector<1x64xf32> to vector<4x64xf32>
    %13 = arith.addf %10, %12 : vector<4x64xf32>
    %c0_9 = arith.constant 0 : index
    %c0_10 = arith.constant 0 : index
    %c0_11 = arith.constant 0 : index
    %14 = vector.load %arg2[%c0_9, %c0_10, %c0_11] : memref<1x14x1xi32, #tpu.memory_space<vmem>>, vector<1x14x1xi32>
    %15 = vector.shape_cast %14 : vector<1x14x1xi32> to vector<14x1xi32>
    %16 = tpu.iota {dimensions = array<i32: 1>} : vector<14x256xi32>
    %17 = vector.broadcast %15 : vector<14x1xi32> to vector<14x256xi32>
    %18 = arith.cmpi eq, %16, %17 : vector<14x256xi32>
    %19 = arith.extui %18 : vector<14x256xi1> to vector<14x256xi32>
    %20 = arith.sitofp %19 : vector<14x256xi32> to vector<14x256xf32>
    %21 = arith.truncf %20 : vector<14x256xf32> to vector<14x256xbf16>
    %c224 = arith.constant 224 : index
    %c0_12 = arith.constant 0 : index
    %22 = vector.load %arg3[%c224, %c0_12] : memref<1184x256xbf16, #tpu.memory_space<vmem>>, vector<256x64xbf16>
    %cst_13 = arith.constant dense<0.000000e+00> : vector<14x64xf32>
    %23 = tpu.matmul %21, %22, %cst_13 {dimension_numbers = #tpu.dot_dimension_numbers<[1], [0], [0], [1], [0, 0, 1, 1], [], []>} : vector<14x256xbf16>, vector<256x64xbf16>, vector<14x64xf32> -> vector<14x64xf32>
    %cst_14 = arith.constant 0.000000e+00 : f32
    %24 = vector.broadcast %cst_14 : f32 to vector<24x64xf32>
    %c0_15 = arith.constant 0 : index
    %c0_16 = arith.constant 0 : index
    %25 = vector.load %arg6[%c0_15, %c0_16] : memref<24x64xf32, #tpu.memory_space<vmem>>, vector<24x64xf32>
    tpu.vector_store %arg6[%c0_15, %c0_16], %24 {strides = array<i32>} : memref<24x64xf32, #tpu.memory_space<vmem>>, vector<24x64xf32>,
    %c0_17 = arith.constant 0 : index
    %c0_18 = arith.constant 0 : index
    %26 = vector.load %arg6[%c0_17, %c0_18] : memref<24x64xf32, #tpu.memory_space<vmem>>, vector<4x64xf32>
    tpu.vector_store %arg6[%c0_17, %c0_18], %13 {strides = array<i32>} : memref<24x64xf32, #tpu.memory_space<vmem>>, vector<4x64xf32>,
    %c8 = arith.constant 8 : index
    %c0_19 = arith.constant 0 : index
    %27 = vector.load %arg6[%c8, %c0_19] : memref<24x64xf32, #tpu.memory_space<vmem>>, vector<14x64xf32>
    tpu.vector_store %arg6[%c8, %c0_19], %23 {strides = array<i32>} : memref<24x64xf32, #tpu.memory_space<vmem>>, vector<14x64xf32>,
    %c0_20 = arith.constant 0 : index
    %c0_21 = arith.constant 0 : index
    %28 = vector.load %arg6[%c0_20, %c0_21] : memref<24x64xf32, #tpu.memory_space<vmem>>, vector<24x64xf32>
    %29 = tpu.iota {dimensions = array<i32: 0>} : vector<24x24xi32>
    %30 = tpu.iota {dimensions = array<i32: 1>} : vector<24x24xi32>
    %c4_i32 = arith.constant 4 : i32
    %31 = vector.broadcast %c4_i32 : i32 to vector<24x24xi32>
    %32 = arith.cmpi slt, %30, %31 : vector<24x24xi32>
    %c8_i32 = arith.constant 8 : i32
    %33 = vector.broadcast %c8_i32 : i32 to vector<24x24xi32>
    %34 = arith.cmpi sge, %30, %33 : vector<24x24xi32>
    %c22_i32 = arith.constant 22 : i32
    %35 = vector.broadcast %c22_i32 : i32 to vector<24x24xi32>
    %36 = arith.cmpi slt, %30, %35 : vector<24x24xi32>
    %37 = arith.andi %34, %36 : vector<24x24xi1>
    %38 = arith.ori %32, %37 : vector<24x24xi1>
    %39 = arith.cmpi sle, %30, %29 : vector<24x24xi32>
    %40 = arith.andi %39, %38 : vector<24x24xi1>
    %cst_22 = arith.constant 0.000000e+00 : f32
    %cst_23 = arith.constant -1.000000e+30 : f32
    %41 = vector.broadcast %cst_22 : f32 to vector<24x24xf32>
    %42 = vector.broadcast %cst_23 : f32 to vector<24x24xf32>
    %43 = arith.select %40, %41, %42 : vector<24x24xi1>, vector<24x24xf32>
    %44 = arith.mulf %28, %28 : vector<24x64xf32>
    %cst_24 = arith.constant dense<0.000000e+00> : vector<24xf32>
    %45 = vector.multi_reduction <add>, %44, %cst_24 [1] : vector<24x64xf32> to vector<24xf32>
    %46 = vector.shape_cast %45 : vector<24xf32> to vector<24x1xf32>
    %cst_25 = arith.constant 6.400000e+01 : f32
    %47 = vector.broadcast %cst_25 : f32 to vector<24x1xf32>
    %48 = arith.divf %46, %47 : vector<24x1xf32>
    %cst_26 = arith.constant 9.99999997E-7 : f32
    %49 = vector.broadcast %cst_26 : f32 to vector<24x1xf32>
    %50 = arith.addf %48, %49 : vector<24x1xf32>
    %51 = math.rsqrt %50 : vector<24x1xf32>
    %52 = vector.broadcast %51 : vector<24x1xf32> to vector<24x64xf32>
    %53 = arith.mulf %28, %52 : vector<24x64xf32>
    %54 = arith.truncf %53 : vector<24x64xf32> to vector<24x64xbf16>
    %cst_27 = arith.constant 0.000000e+00 : f32
    %55 = vector.broadcast %cst_27 : f32 to vector<24x64xf32>
    %c480 = arith.constant 480 : index
    %c0_28 = arith.constant 0 : index
    %56 = vector.load %arg3[%c480, %c0_28] : memref<1184x256xbf16, #tpu.memory_space<vmem>>, vector<64x32xbf16>
    %cst_29 = arith.constant dense<0.000000e+00> : vector<24x32xf32>
    %57 = tpu.matmul %54, %56, %cst_29 {dimension_numbers = #tpu.dot_dimension_numbers<[1], [0], [0], [1], [0, 0, 1, 1], [], []>} : vector<24x64xbf16>, vector<64x32xbf16>, vector<24x32xf32> -> vector<24x32xf32>
    %58 = arith.truncf %57 : vector<24x32xf32> to vector<24x32xbf16>
    %c608 = arith.constant 608 : index
    %c0_30 = arith.constant 0 : index
    %59 = vector.load %arg3[%c608, %c0_30] : memref<1184x256xbf16, #tpu.memory_space<vmem>>, vector<64x32xbf16>
    %cst_31 = arith.constant dense<0.000000e+00> : vector<24x32xf32>
    %60 = tpu.matmul %54, %59, %cst_31 {dimension_numbers = #tpu.dot_dimension_numbers<[1], [0], [0], [1], [0, 0, 1, 1], [], []>} : vector<24x64xbf16>, vector<64x32xbf16>, vector<24x32xf32> -> vector<24x32xf32>
    %61 = arith.truncf %60 : vector<24x32xf32> to vector<24x32xbf16>
    %c736 = arith.constant 736 : index
    %c0_32 = arith.constant 0 : index
    %62 = vector.load %arg3[%c736, %c0_32] : memref<1184x256xbf16, #tpu.memory_space<vmem>>, vector<64x32xbf16>
    %cst_33 = arith.constant dense<0.000000e+00> : vector<24x32xf32>
    %63 = tpu.matmul %54, %62, %cst_33 {dimension_numbers = #tpu.dot_dimension_numbers<[1], [0], [0], [1], [0, 0, 1, 1], [], []>} : vector<24x64xbf16>, vector<64x32xbf16>, vector<24x32xf32> -> vector<24x32xf32>
    %64 = arith.truncf %63 : vector<24x32xf32> to vector<24x32xbf16>
    "tpu.trace_start"() <{level = 10 : i32, message = "qd,kd->qk"}> : () -> ()
    %cst_34 = arith.constant dense<0.000000e+00> : vector<24x24xf32>
    %65 = tpu.matmul %58, %61, %cst_34 {dimension_numbers = #tpu.dot_dimension_numbers<[1], [1], [0], [0], [0, 0, 1, 0], [], []>} : vector<24x32xbf16>, vector<24x32xbf16>, vector<24x24xf32> -> vector<24x24xf32>
    "tpu.trace_stop"() : () -> ()
    %66 = arith.addf %65, %43 : vector<24x24xf32>
    %cst_35 = arith.constant dense<0xFF800000> : vector<24xf32>
    %67 = vector.multi_reduction <maximumf>, %66, %cst_35 [1] : vector<24x24xf32> to vector<24xf32>
    %68 = vector.shape_cast %67 : vector<24xf32> to vector<24x1xf32>
    %69 = vector.broadcast %68 : vector<24x1xf32> to vector<24x24xf32>
    %70 = arith.subf %66, %69 : vector<24x24xf32>
    %71 = math.exp %70 : vector<24x24xf32>
    %cst_36 = arith.constant dense<0.000000e+00> : vector<24xf32>
    %72 = vector.multi_reduction <add>, %71, %cst_36 [1] : vector<24x24xf32> to vector<24xf32>
    %73 = vector.shape_cast %72 : vector<24xf32> to vector<24x1xf32>
    %74 = vector.broadcast %73 : vector<24x1xf32> to vector<24x24xf32>
    %75 = arith.divf %71, %74 : vector<24x24xf32>
    %76 = arith.truncf %75 : vector<24x24xf32> to vector<24x24xbf16>
    "tpu.trace_start"() <{level = 10 : i32, message = "qk,kd->qd"}> : () -> ()
    %cst_37 = arith.constant dense<0.000000e+00> : vector<24x32xf32>
    %77 = tpu.matmul %76, %64, %cst_37 {dimension_numbers = #tpu.dot_dimension_numbers<[1], [0], [0], [1], [0, 0, 1, 1], [], []>} : vector<24x24xbf16>, vector<24x32xbf16>, vector<24x32xf32> -> vector<24x32xf32>
    "tpu.trace_stop"() : () -> ()
    %78 = arith.truncf %77 : vector<24x32xf32> to vector<24x32xbf16>
    %c864 = arith.constant 864 : index
    %c0_38 = arith.constant 0 : index
    %79 = vector.load %arg3[%c864, %c0_38] : memref<1184x256xbf16, #tpu.memory_space<vmem>>, vector<32x64xbf16>
    %cst_39 = arith.constant dense<0.000000e+00> : vector<24x64xf32>
    %80 = tpu.matmul %78, %79, %cst_39 {dimension_numbers = #tpu.dot_dimension_numbers<[1], [0], [0], [1], [0, 0, 1, 1], [], []>} : vector<24x32xbf16>, vector<32x64xbf16>, vector<24x64xf32> -> vector<24x64xf32>
    %81 = arith.addf %55, %80 : vector<24x64xf32>
    %c544 = arith.constant 544 : index
    %c0_40 = arith.constant 0 : index
    %82 = vector.load %arg3[%c544, %c0_40] : memref<1184x256xbf16, #tpu.memory_space<vmem>>, vector<64x32xbf16>
    %cst_41 = arith.constant dense<0.000000e+00> : vector<24x32xf32>
    %83 = tpu.matmul %54, %82, %cst_41 {dimension_numbers = #tpu.dot_dimension_numbers<[1], [0], [0], [1], [0, 0, 1, 1], [], []>} : vector<24x64xbf16>, vector<64x32xbf16>, vector<24x32xf32> -> vector<24x32xf32>
    %84 = arith.truncf %83 : vector<24x32xf32> to vector<24x32xbf16>
    %c672 = arith.constant 672 : index
    %c0_42 = arith.constant 0 : index
    %85 = vector.load %arg3[%c672, %c0_42] : memref<1184x256xbf16, #tpu.memory_space<vmem>>, vector<64x32xbf16>
    %cst_43 = arith.constant dense<0.000000e+00> : vector<24x32xf32>
    %86 = tpu.matmul %54, %85, %cst_43 {dimension_numbers = #tpu.dot_dimension_numbers<[1], [0], [0], [1], [0, 0, 1, 1], [], []>} : vector<24x64xbf16>, vector<64x32xbf16>, vector<24x32xf32> -> vector<24x32xf32>
    %87 = arith.truncf %86 : vector<24x32xf32> to vector<24x32xbf16>
    %c800 = arith.constant 800 : index
    %c0_44 = arith.constant 0 : index
    %88 = vector.load %arg3[%c800, %c0_44] : memref<1184x256xbf16, #tpu.memory_space<vmem>>, vector<64x32xbf16>
    %cst_45 = arith.constant dense<0.000000e+00> : vector<24x32xf32>
    %89 = tpu.matmul %54, %88, %cst_45 {dimension_numbers = #tpu.dot_dimension_numbers<[1], [0], [0], [1], [0, 0, 1, 1], [], []>} : vector<24x64xbf16>, vector<64x32xbf16>, vector<24x32xf32> -> vector<24x32xf32>
    %90 = arith.truncf %89 : vector<24x32xf32> to vector<24x32xbf16>
    "tpu.trace_start"() <{level = 10 : i32, message = "qd,kd->qk"}> : () -> ()
    %cst_46 = arith.constant dense<0.000000e+00> : vector<24x24xf32>
    %91 = tpu.matmul %84, %87, %cst_46 {dimension_numbers = #tpu.dot_dimension_numbers<[1], [1], [0], [0], [0, 0, 1, 0], [], []>} : vector<24x32xbf16>, vector<24x32xbf16>, vector<24x24xf32> -> vector<24x24xf32>
    "tpu.trace_stop"() : () -> ()
    %92 = arith.addf %91, %43 : vector<24x24xf32>
    %cst_47 = arith.constant dense<0xFF800000> : vector<24xf32>
    %93 = vector.multi_reduction <maximumf>, %92, %cst_47 [1] : vector<24x24xf32> to vector<24xf32>
    %94 = vector.shape_cast %93 : vector<24xf32> to vector<24x1xf32>
    %95 = vector.broadcast %94 : vector<24x1xf32> to vector<24x24xf32>
    %96 = arith.subf %92, %95 : vector<24x24xf32>
    %97 = math.exp %96 : vector<24x24xf32>
    %cst_48 = arith.constant dense<0.000000e+00> : vector<24xf32>
    %98 = vector.multi_reduction <add>, %97, %cst_48 [1] : vector<24x24xf32> to vector<24xf32>
    %99 = vector.shape_cast %98 : vector<24xf32> to vector<24x1xf32>
    %100 = vector.broadcast %99 : vector<24x1xf32> to vector<24x24xf32>
    %101 = arith.divf %97, %100 : vector<24x24xf32>
    %102 = arith.truncf %101 : vector<24x24xf32> to vector<24x24xbf16>
    "tpu.trace_start"() <{level = 10 : i32, message = "qk,kd->qd"}> : () -> ()
    %cst_49 = arith.constant dense<0.000000e+00> : vector<24x32xf32>
    %103 = tpu.matmul %102, %90, %cst_49 {dimension_numbers = #tpu.dot_dimension_numbers<[1], [0], [0], [1], [0, 0, 1, 1], [], []>} : vector<24x24xbf16>, vector<24x32xbf16>, vector<24x32xf32> -> vector<24x32xf32>
    "tpu.trace_stop"() : () -> ()
    %104 = arith.truncf %103 : vector<24x32xf32> to vector<24x32xbf16>
    %c896 = arith.constant 896 : index
    %c0_50 = arith.constant 0 : index
    %105 = vector.load %arg3[%c896, %c0_50] : memref<1184x256xbf16, #tpu.memory_space<vmem>>, vector<32x64xbf16>
    %cst_51 = arith.constant dense<0.000000e+00> : vector<24x64xf32>
    %106 = tpu.matmul %104, %105, %cst_51 {dimension_numbers = #tpu.dot_dimension_numbers<[1], [0], [0], [1], [0, 0, 1, 1], [], []>} : vector<24x32xbf16>, vector<32x64xbf16>, vector<24x64xf32> -> vector<24x64xf32>
    %107 = arith.addf %81, %106 : vector<24x64xf32>
    %108 = arith.addf %28, %107 : vector<24x64xf32>
    %109 = arith.mulf %108, %108 : vector<24x64xf32>
    %cst_52 = arith.constant dense<0.000000e+00> : vector<24xf32>
    %110 = vector.multi_reduction <add>, %109, %cst_52 [1] : vector<24x64xf32> to vector<24xf32>
    %111 = vector.shape_cast %110 : vector<24xf32> to vector<24x1xf32>
    %cst_53 = arith.constant 6.400000e+01 : f32
    %112 = vector.broadcast %cst_53 : f32 to vector<24x1xf32>
    %113 = arith.divf %111, %112 : vector<24x1xf32>
    %cst_54 = arith.constant 9.99999997E-7 : f32
    %114 = vector.broadcast %cst_54 : f32 to vector<24x1xf32>
    %115 = arith.addf %113, %114 : vector<24x1xf32>
    %116 = math.rsqrt %115 : vector<24x1xf32>
    %117 = vector.broadcast %116 : vector<24x1xf32> to vector<24x64xf32>
    %118 = arith.mulf %108, %117 : vector<24x64xf32>
    %119 = arith.truncf %118 : vector<24x64xf32> to vector<24x64xbf16>
    %c928 = arith.constant 928 : index
    %c0_55 = arith.constant 0 : index
    %120 = vector.load %arg3[%c928, %c0_55] : memref<1184x256xbf16, #tpu.memory_space<vmem>>, vector<64x256xbf16>
    %cst_56 = arith.constant dense<0.000000e+00> : vector<24x256xf32>
    %121 = tpu.matmul %119, %120, %cst_56 {dimension_numbers = #tpu.dot_dimension_numbers<[1], [0], [0], [1], [0, 0, 1, 1], [], []>} : vector<24x64xbf16>, vector<64x256xbf16>, vector<24x256xf32> -> vector<24x256xf32>
    %122 = vector.extract_strided_slice %121 {offsets = [0, 0], sizes = [24, 128], strides = [1, 1]} : vector<24x256xf32> to vector<24x128xf32>
    %123 = vector.extract_strided_slice %121 {offsets = [0, 128], sizes = [24, 128], strides = [1, 1]} : vector<24x256xf32> to vector<24x128xf32>
    %124 = arith.negf %122 : vector<24x128xf32>
    %125 = math.exp %124 : vector<24x128xf32>
    %cst_57 = arith.constant 1.000000e+00 : f32
    %126 = vector.broadcast %cst_57 : f32 to vector<24x128xf32>
    %127 = arith.addf %126, %125 : vector<24x128xf32>
    %128 = arith.divf %126, %127 : vector<24x128xf32>
    %129 = arith.mulf %122, %128 : vector<24x128xf32>
    %130 = arith.mulf %129, %123 : vector<24x128xf32>
    %131 = arith.truncf %130 : vector<24x128xf32> to vector<24x128xbf16>
    %c992 = arith.constant 992 : index
    %c0_58 = arith.constant 0 : index
    %132 = vector.load %arg3[%c992, %c0_58] : memref<1184x256xbf16, #tpu.memory_space<vmem>>, vector<128x64xbf16>
    %cst_59 = arith.constant dense<0.000000e+00> : vector<24x64xf32>
    %133 = tpu.matmul %131, %132, %cst_59 {dimension_numbers = #tpu.dot_dimension_numbers<[1], [0], [0], [1], [0, 0, 1, 1], [], []>} : vector<24x128xbf16>, vector<128x64xbf16>, vector<24x64xf32> -> vector<24x64xf32>
    %134 = arith.addf %108, %133 : vector<24x64xf32>
    %135 = vector.extract_strided_slice %134 {offsets = [8, 0], sizes = [13, 64], strides = [1, 1]} : vector<24x64xf32> to vector<13x64xf32>
    %136 = arith.mulf %135, %135 : vector<13x64xf32>
    %cst_60 = arith.constant dense<0.000000e+00> : vector<13xf32>
    %137 = vector.multi_reduction <add>, %136, %cst_60 [1] : vector<13x64xf32> to vector<13xf32>
    %138 = vector.shape_cast %137 : vector<13xf32> to vector<13x1xf32>
    %cst_61 = arith.constant 6.400000e+01 : f32
    %139 = vector.broadcast %cst_61 : f32 to vector<13x1xf32>
    %140 = arith.divf %138, %139 : vector<13x1xf32>
    %cst_62 = arith.constant 9.99999997E-7 : f32
    %141 = vector.broadcast %cst_62 : f32 to vector<13x1xf32>
    %142 = arith.addf %140, %141 : vector<13x1xf32>
    %143 = math.rsqrt %142 : vector<13x1xf32>
    %144 = vector.broadcast %143 : vector<13x1xf32> to vector<13x64xf32>
    %145 = arith.mulf %135, %144 : vector<13x64xf32>
    %146 = arith.truncf %145 : vector<13x64xf32> to vector<13x64xbf16>
    %c1120 = arith.constant 1120 : index
    %c0_63 = arith.constant 0 : index
    %147 = vector.load %arg3[%c1120, %c0_63] : memref<1184x256xbf16, #tpu.memory_space<vmem>>, vector<64x256xbf16>
    %cst_64 = arith.constant dense<0.000000e+00> : vector<13x256xf32>
    %148 = tpu.matmul %146, %147, %cst_64 {dimension_numbers = #tpu.dot_dimension_numbers<[1], [0], [0], [1], [0, 0, 1, 1], [], []>} : vector<13x64xbf16>, vector<64x256xbf16>, vector<13x256xf32> -> vector<13x256xf32>
    %c0_i32 = arith.constant 0 : i32
    %149 = vector.broadcast %c0_i32 : i32 to vector<14x1xi32>
    %150 = arith.cmpi eq, %15, %149 : vector<14x1xi32>
    %c-100_i32 = arith.constant -100 : i32
    %151 = vector.broadcast %c-100_i32 : i32 to vector<14x1xi32>
    %152 = arith.select %150, %151, %15 : vector<14x1xi1>, vector<14x1xi32>
    %153 = vector.extract_strided_slice %152 {offsets = [1, 0], sizes = [13, 1], strides = [1, 1]} : vector<14x1xi32> to vector<13x1xi32>
    %cst_65 = arith.constant dense<0xFF800000> : vector<13xf32>
    %154 = vector.multi_reduction <maximumf>, %148, %cst_65 [1] : vector<13x256xf32> to vector<13xf32>
    %155 = vector.shape_cast %154 : vector<13xf32> to vector<13x1xf32>
    %156 = vector.broadcast %155 : vector<13x1xf32> to vector<13x256xf32>
    %157 = arith.subf %148, %156 : vector<13x256xf32>
    %158 = math.exp %157 : vector<13x256xf32>
    %cst_66 = arith.constant dense<0.000000e+00> : vector<13xf32>
    %159 = vector.multi_reduction <add>, %158, %cst_66 [1] : vector<13x256xf32> to vector<13xf32>
    %160 = vector.shape_cast %159 : vector<13xf32> to vector<13x1xf32>
    %161 = math.log %160 : vector<13x1xf32>
    %162 = arith.addf %155, %161 : vector<13x1xf32>
    %163 = tpu.iota {dimensions = array<i32: 1>} : vector<13x256xi32>
    %164 = vector.broadcast %153 : vector<13x1xi32> to vector<13x256xi32>
    %165 = arith.cmpi eq, %163, %164 : vector<13x256xi32>
    %cst_67 = arith.constant 0.000000e+00 : f32
    %166 = vector.broadcast %cst_67 : f32 to vector<13x256xf32>
    %167 = arith.select %165, %148, %166 : vector<13x256xi1>, vector<13x256xf32>
    %cst_68 = arith.constant dense<0.000000e+00> : vector<13xf32>
    %168 = vector.multi_reduction <add>, %167, %cst_68 [1] : vector<13x256xf32> to vector<13xf32>
    %169 = vector.shape_cast %168 : vector<13xf32> to vector<13x1xf32>
    %c-100_i32_69 = arith.constant -100 : i32
    %170 = vector.broadcast %c-100_i32_69 : i32 to vector<13x1xi32>
    %171 = arith.cmpi ne, %153, %170 : vector<13x1xi32>
    %172 = arith.subf %162, %169 : vector<13x1xf32>
    %cst_70 = arith.constant 0.000000e+00 : f32
    %173 = vector.broadcast %cst_70 : f32 to vector<13x1xf32>
    %174 = arith.select %171, %172, %173 : vector<13x1xi1>, vector<13x1xf32>
    %175 = vector.shape_cast %174 : vector<13x1xf32> to vector<1x13x1xf32>
    %cst_71 = arith.constant dense<0.000000e+00> : vector<1xf32>
    %176 = vector.multi_reduction <add>, %175, %cst_71 [1, 2] : vector<1x13x1xf32> to vector<1xf32>
    %177 = vector.shape_cast %176 : vector<1xf32> to vector<1x1x1xf32>
    %178 = vector.extract %177[0, 0, 0] : f32 from vector<1x1x1xf32>
    %179 = vector.broadcast %178 : f32 to vector<1x1xf32>
    %180 = arith.extui %171 : vector<13x1xi1> to vector<13x1xi32>
    %181 = arith.sitofp %180 : vector<13x1xi32> to vector<13x1xf32>
    %182 = vector.shape_cast %181 : vector<13x1xf32> to vector<1x13x1xf32>
    %cst_72 = arith.constant dense<0.000000e+00> : vector<1xf32>
    %183 = vector.multi_reduction <add>, %182, %cst_72 [1, 2] : vector<1x13x1xf32> to vector<1xf32>
    %184 = vector.shape_cast %183 : vector<1xf32> to vector<1x1x1xf32>
    %185 = vector.extract %184[0, 0, 0] : f32 from vector<1x1x1xf32>
    %186 = vector.broadcast %185 : f32 to vector<1x1xf32>
    %187 = tpu.iota {dimensions = array<i32: 0>} : vector<8x128xi32>
    %c0_i32_73 = arith.constant 0 : i32
    %188 = vector.broadcast %c0_i32_73 : i32 to vector<8x128xi32>
    %189 = arith.cmpi eq, %187, %188 : vector<8x128xi32>
    %c1_i32 = arith.constant 1 : i32
    %190 = vector.broadcast %c1_i32 : i32 to vector<8x128xi32>
    %191 = arith.cmpi eq, %187, %190 : vector<8x128xi32>
    %cst_74 = arith.constant 0.000000e+00 : f32
    %192 = vector.shape_cast %186 : vector<1x1xf32> to vector<1x1xf32>
    %193 = vector.broadcast %192 : vector<1x1xf32> to vector<8x128xf32>
    %194 = vector.broadcast %cst_74 : f32 to vector<8x128xf32>
    %195 = arith.select %191, %193, %194 : vector<8x128xi1>, vector<8x128xf32>
    %196 = vector.shape_cast %179 : vector<1x1xf32> to vector<1x1xf32>
    %197 = vector.broadcast %196 : vector<1x1xf32> to vector<8x128xf32>
    %198 = arith.select %189, %197, %195 : vector<8x128xi1>, vector<8x128xf32>
    %c0_75 = arith.constant 0 : index
    %c0_76 = arith.constant 0 : index
    %c0_77 = arith.constant 0 : index
    %199 = vector.load %arg5[%c0_75, %c0_76, %c0_77] : memref<1x8x128xf32, #tpu.memory_space<vmem>>, vector<1x8x128xf32>
    %200 = vector.shape_cast %199 : vector<1x8x128xf32> to vector<8x128xf32>
    %201 = vector.shape_cast %198 : vector<8x128xf32> to vector<1x8x128xf32>
    tpu.vector_store %arg5[%c0_75, %c0_76, %c0_77], %201 {strides = array<i32>} : memref<1x8x128xf32, #tpu.memory_space<vmem>>, vector<1x8x128xf32>,
    return
  }
  func.func @transform_0(%arg0: i32) -> (i32, i32, i32) {
    %c0_i32 = arith.constant 0 : i32
    %c0_i32_0 = arith.constant 0 : i32
    %c0_i32_1 = arith.constant 0 : i32
    return %arg0, %c0_i32, %c0_i32_0 : i32, i32, i32
  }
  func.func @transform_1(%arg0: i32) -> (i32, i32, i32) {
    %c0_i32 = arith.constant 0 : i32
    %c0_i32_0 = arith.constant 0 : i32
    %c0_i32_1 = arith.constant 0 : i32
    return %arg0, %c0_i32, %c0_i32_0 : i32, i32, i32
  }
  func.func @transform_2(%arg0: i32) -> (i32, i32) {
    %c0_i32 = arith.constant 0 : i32
    %c0_i32_0 = arith.constant 0 : i32
    %c0_i32_1 = arith.constant 0 : i32
    return %c0_i32, %c0_i32_0 : i32, i32
  }
  func.func @transform_3(%arg0: i32) -> (i32, i32) {
    %c0_i32 = arith.constant 0 : i32
    %c0_i32_0 = arith.constant 0 : i32
    %c0_i32_1 = arith.constant 0 : i32
    return %c0_i32, %c0_i32_0 : i32, i32
  }
  func.func @transform_4(%arg0: i32) -> (i32, i32, i32) {
    %c0_i32 = arith.constant 0 : i32
    %c0_i32_0 = arith.constant 0 : i32
    %c0_i32_1 = arith.constant 0 : i32
    return %arg0, %c0_i32, %c0_i32_0 : i32, i32, i32
  }
}

</mosaic_0001>

<llo_original>
// kernel: soft_prompt_image_caption_forward.1
$region0: #{soft_prompt_image_caption_forward.1}
  #allocation0 [shape = 'u32[]', space=smem, size = 0x4, offset = 0x4, fixed_abs, tag = 'smem constant byte address 0x4 - core index']
  #allocation1 [shape = 'u32[144,128]{1,0:T(1,128)}', space=vmem, size = 0x12000, scoped, tag = 'internal scratch']
  #allocation2 [shape = 'f32[24,64]{1,0:T(8,128)}', space=vmem, size = 0x3000, scoped, tag = 'scratch operand']
  %s0 = inlined_call_operand.vmem [shape: f32[2,4,192], index: 0, kind: input, shape index: {}]
  %s1 = inlined_call_operand.vmem [shape: s32[2,14,1], index: 1, kind: input, shape index: {}]
  %s2 = inlined_call_operand.hbm [shape: bf16[1184,256], index: 2, kind: input, shape index: {}]
  %s3 = inlined_call_operand.vmem [shape: f32[8,128], index: 3, kind: input, shape index: {}]
  %s4 = inlined_call_operand.vmem [shape: f32[2,8,128], index: 4, kind: output, shape index: {}]
  %s5 = sld [smem:[#allocation0]]
  $region53: #{soft_prompt_image_caption_forward.1} parent=0
    _
  %s7 = ssub.s32 1, %s5
  %s8 = scalar_select 0, %s7, %s5
  $region1: #{soft_prompt_image_caption_forward.1} parent=0
    #allocation3 [shape = 'u8[606208]{0}', space=vmem, size = 0x94000, scoped, tag = 'input window, operand 2, single buffered']
    #allocation4 [shape = 's32[2]{0}', space=sflag, size = 0x8, scoped, tag = 'scoped memory for soft_prompt_image_caption_forward.1']
    %9 = vsyncpa [#allocation4], 0
    loop: start=0, step=1, limit=4
    $region2: #{soft_prompt_image_caption_forward.1} parent=1 // loop_pre_header
      _
    $region3: #{soft_prompt_image_caption_forward.1} parent=1 // loop_header
      %s11 = sphi 0, %s15
      %p12 = scmp.ge.s32.totalorder %s11, 4
      %s21 = sphi 0, %s23
      %s24 = sphi 0, %s21
      %s25 = sphi 0, %s24
      %s41 = sphi 0, %s25
      %s47 = sphi 0, %s49
      %s50 = sphi 0, %s47
      %s51 = sphi 0, %s50
      %s67 = sphi 0, %s51
      %s71 = sphi 0, %s71
      %s73 = sphi 0, %s71
      %s74 = sphi 0, %s73
      %s88 = sphi 0, %s74
      %s92 = sphi 0, %s92
      %s94 = sphi 0, %s92
      %s95 = sphi 0, %s94
      %s109 = sphi 0, %s95
      %s115 = sphi 0, %s117
      %s118 = sphi 0, %s115
      %s119 = sphi 0, %s118
      %s135 = sphi 0, %s119
    $region4: #{soft_prompt_image_caption_forward.1} parent=1 // loop_header_branch
      %14 = sbr.rel (%p12) target = $region8
    $region5: #{soft_prompt_image_caption_forward.1} parent=1 // loop_body
      %s16 = ssub.s32 %s11, 1
      %s17 = ssub.s32 %s11, 2
      %s18 = sadd.s32 %s11, 1
      %s19 = ssub.s32 %s11, %s18
      %p20 = scmp.eq.s32.totalorder %s19, 0
      %s22 = sadd.s32 %s21, 1
      %s23 = scalar_select %p20, %s21, %s22
      %p26 = pneg %p20
      %p27 = scmp.eq.s32.totalorder %s11, 1
      %p28 = por %p26, %p27
      %p29 = scmp.ne.s32.totalorder %s21, %s24
      %p30 = scmp.eq.s32.totalorder %s11, 0
      %p31 = por %p29, %p30
      %p32 = scmp.ne.s32.totalorder %s21, %s24
      %p33 = scmp.eq.s32.totalorder %s16, 1
      %p34 = por %p32, %p33
      %p35 = scmp.ne.s32.totalorder %s24, %s25
      %p36 = scmp.eq.s32.totalorder %s16, 0
      %p37 = por %p35, %p36
      %p38 = scmp.ne.s32.totalorder %s24, %s25
      %p39 = scmp.eq.s32.totalorder %s17, 1
      %p40 = por %p38, %p39
      %p42 = scmp.ne.s32.totalorder %s25, %s41
      %p43 = scmp.eq.s32.totalorder %s17, 0
      %p44 = por %p42, %p43
      %s45 = ssub.s32 %s11, %s18
      %p46 = scmp.eq.s32.totalorder %s45, 0
      %s48 = sadd.s32 %s47, 1
      %s49 = scalar_select %p46, %s47, %s48
      %p52 = pneg %p46
      %p53 = scmp.eq.s32.totalorder %s11, 1
      %p54 = por %p52, %p53
      %p55 = scmp.ne.s32.totalorder %s47, %s50
      %p56 = scmp.eq.s32.totalorder %s11, 0
      %p57 = por %p55, %p56
      %p58 = scmp.ne.s32.totalorder %s47, %s50
      %p59 = scmp.eq.s32.totalorder %s16, 1
      %p60 = por %p58, %p59
      %p61 = scmp.ne.s32.totalorder %s50, %s51
      %p62 = scmp.eq.s32.totalorder %s16, 0
      %p63 = por %p61, %p62
      %p64 = scmp.ne.s32.totalorder %s50, %s51
      %p65 = scmp.eq.s32.totalorder %s17, 1
      %p66 = por %p64, %p65
      %p68 = scmp.ne.s32.totalorder %s51, %s67
      %p69 = scmp.eq.s32.totalorder %s17, 0
      %p70 = por %p68, %p69
      %s72 = sadd.s32 %s71, 1
      %p75 = scmp.eq.s32.totalorder %s11, 1
      %p76 = scmp.ne.s32.totalorder %s71, %s73
      %p77 = scmp.eq.s32.totalorder %s11, 0
      %p78 = por %p76, %p77
      %p79 = scmp.ne.s32.totalorder %s71, %s73
      %p80 = scmp.eq.s32.totalorder %s16, 1
      %p81 = por %p79, %p80
      %p82 = scmp.ne.s32.totalorder %s73, %s74
      %p83 = scmp.eq.s32.totalorder %s16, 0
      %p84 = por %p82, %p83
      %p85 = scmp.ne.s32.totalorder %s73, %s74
      %p86 = scmp.eq.s32.totalorder %s17, 1
      %p87 = por %p85, %p86
      %p89 = scmp.ne.s32.totalorder %s74, %s88
      %p90 = scmp.eq.s32.totalorder %s17, 0
      %p91 = por %p89, %p90
      %s93 = sadd.s32 %s92, 1
      %p96 = scmp.eq.s32.totalorder %s11, 1
      %p97 = scmp.ne.s32.totalorder %s92, %s94
      %p98 = scmp.eq.s32.totalorder %s11, 0
      %p99 = por %p97, %p98
      %p100 = scmp.ne.s32.totalorder %s92, %s94
      %p101 = scmp.eq.s32.totalorder %s16, 1
      %p102 = por %p100, %p101
      %p103 = scmp.ne.s32.totalorder %s94, %s95
      %p104 = scmp.eq.s32.totalorder %s16, 0
      %p105 = por %p103, %p104
      %p106 = scmp.ne.s32.totalorder %s94, %s95
      %p107 = scmp.eq.s32.totalorder %s17, 1
      %p108 = por %p106, %p107
      %p110 = scmp.ne.s32.totalorder %s95, %s109
      %p111 = scmp.eq.s32.totalorder %s17, 0
      %p112 = por %p110, %p111
      %s113 = ssub.s32 %s11, %s18
      %p114 = scmp.eq.s32.totalorder %s113, 0
      %s116 = sadd.s32 %s115, 1
      %s117 = scalar_select %p114, %s115, %s116
      %p120 = pneg %p114
      %p121 = scmp.eq.s32.totalorder %s11, 1
      %p122 = por %p120, %p121
      %p123 = scmp.ne.s32.totalorder %s115, %s118
      %p124 = scmp.eq.s32.totalorder %s11, 0
      %p125 = por %p123, %p124
      %p126 = scmp.ne.s32.totalorder %s115, %s118
      %p127 = scmp.eq.s32.totalorder %s16, 1
      %p128 = por %p126, %p127
      %p129 = scmp.ne.s32.totalorder %s118, %s119
      %p130 = scmp.eq.s32.totalorder %s16, 0
      %p131 = por %p129, %p130
      %p132 = scmp.ne.s32.totalorder %s118, %s119
      %p133 = scmp.eq.s32.totalorder %s17, 1
      %p134 = por %p132, %p133
      %p136 = scmp.ne.s32.totalorder %s119, %s135
      %p137 = scmp.eq.s32.totalorder %s17, 0
      %p138 = por %p136, %p137
      %p139 = scmp.le.s32.totalorder 1, %s11
      %p140 = scmp.lt.s32.totalorder %s11, 3
      %p141 = pnand %p139, %p140
      %p142 = pneg %p141
      // Predicated region
      $region9: #{soft_prompt_image_caption_forward.1} parent=5 // pred_check
        _
      $region10: #{soft_prompt_image_caption_forward.1} parent=5 // pred_check_branch
        %144 = sbr.rel (%p141) target = $region12
      $region11: #{soft_prompt_image_caption_forward.1} parent=5 // pred_region
        %s145 = ssub.s32 %s11, 1
        // Predicated region
        $region13: #{soft_prompt_image_caption_forward.1} parent=11 // pred_check
          %p146 = pneg %p84
        $region14: #{soft_prompt_image_caption_forward.1} parent=11 // pred_check_branch
          %148 = sbr.rel (%p146) target = $region16
        $region15: #{soft_prompt_image_caption_forward.1} parent=11 // pred_region
          %s150 = ssub.s32 18944, 18944
          %151 = vsyncadd [#allocation4], %s150
          %s152 = sshll.u32 [#allocation3], 4
          %s153 = int_to_ptr.vmem [resolvable:$true] %s152
          %158 = dma.hbm_to_vmem [thread:$0]  %s2, 18944, %s153, [#allocation4], 128, 128, 8
        $region16: #{soft_prompt_image_caption_forward.1} parent=11 // pred_fallthru
          _
        // Predicated region
        $region17: #{soft_prompt_image_caption_forward.1} parent=11 // pred_check
          %p159 = pneg %p105
        $region18: #{soft_prompt_image_caption_forward.1} parent=11 // pred_check_branch
          %161 = sbr.rel (%p159) target = $region20
        $region19: #{soft_prompt_image_caption_forward.1} parent=11 // pred_region
          _
        $region20: #{soft_prompt_image_caption_forward.1} parent=11 // pred_fallthru
          _
      $region12: #{soft_prompt_image_caption_forward.1} parent=5 // pred_fallthru
        _
      %p162 = scmp.lt.s32.totalorder %s11, 2
      // Predicated region
      $region21: #{soft_prompt_image_caption_forward.1} parent=5 // pred_check
        %p163 = pneg %p162
      $region22: #{soft_prompt_image_caption_forward.1} parent=5 // pred_check_branch
        %165 = sbr.rel (%p163) target = $region24
      $region23: #{soft_prompt_image_caption_forward.1} parent=5 // pred_region
        // Predicated region
        $region25: #{soft_prompt_image_caption_forward.1} parent=23 // pred_check
          %p166 = pneg %p31
        $region26: #{soft_prompt_image_caption_forward.1} parent=23 // pred_check_branch
          %168 = sbr.rel (%p166) target = $region28
        $region27: #{soft_prompt_image_caption_forward.1} parent=23 // pred_region
          %p169 = scmp.lt.s32.totalorder %s11, 1
          %s170 = scalar_select %p169, %s11, 1
          %s171 = smul.addr %s170, 2
          %s172 = smul.addr %s171, 4
          %s173 = scalar_lea.vmem %s0, %s172
        $region28: #{soft_prompt_image_caption_forward.1} parent=23 // pred_fallthru
          _
        // Predicated region
        $region29: #{soft_prompt_image_caption_forward.1} parent=23 // pred_check
          %p174 = pneg %p57
        $region30: #{soft_prompt_image_caption_forward.1} parent=23 // pred_check_branch
          %176 = sbr.rel (%p174) target = $region32
        $region31: #{soft_prompt_image_caption_forward.1} parent=23 // pred_region
          %p177 = scmp.lt.s32.totalorder %s11, 1
          %s178 = scalar_select %p177, %s11, 1
          %s179 = smul.addr %s178, 2
          %s180 = smul.addr %s179, 8
          %s181 = scalar_lea.vmem %s1, %s180
        $region32: #{soft_prompt_image_caption_forward.1} parent=23 // pred_fallthru
          _
      $region24: #{soft_prompt_image_caption_forward.1} parent=5 // pred_fallthru
        _
      %p182 = scmp.le.s32.totalorder 1, %s11
      %p183 = scmp.lt.s32.totalorder %s11, 3
      %p184 = pnand %p182, %p183
      %p185 = pneg %p184
      // Predicated region
      $region33: #{soft_prompt_image_caption_forward.1} parent=5 // pred_check
        _
      $region34: #{soft_prompt_image_caption_forward.1} parent=5 // pred_check_branch
        %187 = sbr.rel (%p184) target = $region36
      $region35: #{soft_prompt_image_caption_forward.1} parent=5 // pred_region
        %s188 = ssub.s32 %s11, 1
        // Predicated region
        $region37: #{soft_prompt_image_caption_forward.1} parent=35 // pred_check
          %p189 = pneg %p84
        $region38: #{soft_prompt_image_caption_forward.1} parent=35 // pred_check_branch
          %191 = sbr.rel (%p189) target = $region40
        $region39: #{soft_prompt_image_caption_forward.1} parent=35 // pred_region
          %192 = dma.done [#allocation4], 18944
        $region40: #{soft_prompt_image_caption_forward.1} parent=35 // pred_fallthru
          _
        %p193 = scmp.lt.s32.totalorder %s16, 1
        %s194 = scalar_select %p193, %s16, 1
        %s195 = smul.addr %s194, 2
        %s196 = smul.addr %s195, 4
        %s197 = scalar_lea.vmem %s0, %s196
        %p198 = pneg %p37
        %p199 = pneg %p34
        %p200 = scmp.lt.s32.totalorder %s16, 1
        %s201 = scalar_select %p200, %s16, 1
        %s202 = smul.addr %s201, 2
        %s203 = smul.addr %s202, 8
        %s204 = scalar_lea.vmem %s1, %s203
        %p205 = pneg %p63
        %p206 = pneg %p60
        %p207 = pneg %p84
        %p208 = pneg %p81
        %p209 = pneg %p105
        %p210 = pneg %p102
        %p211 = pneg %p131
        %p212 = pneg %p128
        %p213 = scmp.lt.s32.totalorder %s16, 1
        %s214 = scalar_select %p213, %s16, 1
        %s215 = smul.addr %s214, 8
        %s216 = scalar_lea.vmem %s4, %s215
        %p217 = scmp.lt.s32.totalorder %s16, 1
        %s218 = scalar_select %p217, %s16, 1
        %s219 = smul.addr %s218, 2
        %s220 = smul.addr %s219, 4
        %s221 = scalar_lea.vmem %s0, %s220
        %p222 = scmp.lt.s32.totalorder %s16, 1
        %s223 = scalar_select %p222, %s16, 1
        %s224 = smul.addr %s223, 2
        %s225 = smul.addr %s224, 8
        %s226 = scalar_lea.vmem %s1, %s225
        %p227 = scmp.lt.s32.totalorder %s16, 1
        %s228 = scalar_select %p227, %s16, 1
        %s229 = smul.addr %s228, 8
        %s230 = scalar_lea.vmem %s4, %s229
        %v232 = vld [vmem:[%s221] sm:$0xff]
        %v234 = vcombine.high %v232, %v232
        %v236 = vpack.c.bf16 %v232, %v232
        %v237 = vpack.c.bf16 %v234, %v234
        %v238 = vld [vmem:[#allocation3] sm:$0xf]
        %v239 = vld [vmem:[#allocation3 + $0x8] sm:$0xf]
        %v240 = vld [vmem:[#allocation3 + $0x10] sm:$0xf]
        %v241 = vld [vmem:[#allocation3 + $0x18] sm:$0xf]
        %v242 = vld [vmem:[#allocation3 + $0x20] sm:$0xf]
        %v243 = vld [vmem:[#allocation3 + $0x28] sm:$0xf]
        %v244 = vld [vmem:[#allocation3 + $0x30] sm:$0xf]
        %v245 = vld [vmem:[#allocation3 + $0x38] sm:$0xf]
        %v246 = vld [vmem:[#allocation3 + $0x40] sm:$0xf]
        %v247 = vld [vmem:[#allocation3 + $0x48] sm:$0xf]
        %v248 = vld [vmem:[#allocation3 + $0x50] sm:$0xf]
        %v249 = vld [vmem:[#allocation3 + $0x58] sm:$0xf]
        %v250 = vld [vmem:[#allocation3 + $0x60] sm:$0xf]
        %v251 = vld [vmem:[#allocation3 + $0x68] sm:$0xf]
        %v252 = vld [vmem:[#allocation3 + $0x70] sm:$0xf]
        %v253 = vld [vmem:[#allocation3 + $0x78] sm:$0xf]
        %v254 = vld [vmem:[#allocation3 + $0x80] sm:$0xf]
        %v255 = vld [vmem:[#allocation3 + $0x88] sm:$0xf]
        %v256 = vld [vmem:[#allocation3 + $0x90] sm:$0xf]
        %v257 = vld [vmem:[#allocation3 + $0x98] sm:$0xf]
        %v258 = vld [vmem:[#allocation3 + $0xa0] sm:$0xf]
        %v259 = vld [vmem:[#allocation3 + $0xa8] sm:$0xf]
        %v260 = vld [vmem:[#allocation3 + $0xb0] sm:$0xf]
        %v261 = vld [vmem:[#allocation3 + $0xb8] sm:$0xf]
        %v262 = vld [vmem:[%s3] sm:$0x1]
        %v263 = vlaneseq
        %v264 = vshrl.u32 %v263, 7
        %v265 = vsub.s32 0, %v264
        %v266 = vrot.slane %v262, %v265
        %v291 = vunpack.c.l.b16 %v238
        %v292 = vunpack.c.l.b16 %v239
        %v293 = vunpack.c.l.b16 %v240
        %v294 = vunpack.c.l.b16 %v241
        %v295 = vunpack.c.l.b16 %v242
        %v296 = vunpack.c.l.b16 %v243
        %v297 = vunpack.c.l.b16 %v244
        %v298 = vunpack.c.l.b16 %v245
        %v299 = vunpack.c.l.b16 %v246
        %v300 = vunpack.c.l.b16 %v247
        %v301 = vunpack.c.l.b16 %v248
        %v302 = vunpack.c.l.b16 %v249
        %v303 = vunpack.c.l.b16 %v250
        %v304 = vunpack.c.l.b16 %v251
        %v305 = vunpack.c.l.b16 %v252
        %v306 = vunpack.c.l.b16 %v253
        %v307 = vunpack.c.l.b16 %v254
        %v308 = vunpack.c.l.b16 %v255
        %v309 = vunpack.c.l.b16 %v256
        %v310 = vunpack.c.l.b16 %v257
        %v311 = vunpack.c.l.b16 %v258
        %v312 = vunpack.c.l.b16 %v259
        %v313 = vunpack.c.l.b16 %v260
        %v314 = vunpack.c.l.b16 %v261
        %v315 = vpack.c.b16 %v292, %v291
        %v316 = vpack.c.b16 %v294, %v293
        %v317 = vpack.c.b16 %v296, %v295
        %v318 = vpack.c.b16 %v298, %v297
        %v319 = vpack.c.b16 %v300, %v299
        %v320 = vpack.c.b16 %v302, %v301
        %v321 = vpack.c.b16 %v304, %v303
        %v322 = vpack.c.b16 %v306, %v305
        %v323 = vpack.c.b16 %v308, %v307
        %v324 = vpack.c.b16 %v310, %v309
        %v325 = vpack.c.b16 %v312, %v311
        %v326 = vpack.c.b16 %v314, %v313
        %vm339 = vcmask 523264
        %v341 = vsel %vm339, %v237, 0
        %343 = vmatprep.subr.bf16.mxu0 0
        %344 = vmatpush1.bf16.msra.mxu0 %v315
        %345 = vmatprep.subr.bf16.mxu0 0
        %346 = vmatpush1.bf16.msra.mxu0 %v316
        %347 = vmatprep.subr.bf16.mxu0 0
        %348 = vmatpush1.bf16.msra.mxu0 %v317
        %349 = vmatprep.subr.bf16.mxu0 0
        %350 = vmatpush1.bf16.msra.mxu0 %v318
        %351 = vmatprep.subr.bf16.mxu0 0
        %352 = vmatpush1.bf16.msra.mxu0 %v319
        %353 = vmatprep.subr.bf16.mxu0 0
        %354 = vmatpush1.bf16.msra.mxu0 %v320
        %355 = vmatprep.subr.bf16.mxu0 0
        %356 = vmatpush1.bf16.msra.mxu0 %v321
        %357 = vmatprep.subr.bf16.mxu0 0
        %358 = vmatpush1.bf16.msra.mxu0 %v322
        %359 = vmatprep.subr.bf16.mxu0 0
        %360 = vmatpush1.bf16.msra.mxu0 %v323
        %361 = vmatprep.subr.bf16.mxu0 0
        %362 = vmatpush1.bf16.msra.mxu0 %v324
        %363 = vmatprep.subr.bf16.mxu0 0
        %364 = vmatpush1.bf16.msra.mxu0 %v325
        %365 = vmatprep.subr.bf16.mxu0 0
        %366 = vmatpush1.bf16.msra.mxu0 %v326
        %367 = vmatprep.subr.bf16.mxu0 0
        %368 = vmatpush1.bf16.msra.mxu0 0
        %369 = vmatprep.subr.bf16.mxu0 0
        %370 = vmatpush1.bf16.msra.mxu0 0
        %371 = vmatprep.subr.bf16.mxu0 0
        %372 = vmatpush1.bf16.msra.mxu0 0
        %373 = vmatprep.subr.bf16.mxu0 0
        %374 = vmatpush1.bf16.msra.mxu0 0
        %375 = vmatprep.mubr.bf16.mxu0 %v341
        %376 = vmatmul.mubr.bf16.gmra.mrb[0].mxu0 %v236
        %v377 = vpop.f32.mrb[0].mxu0
        %v378 = vadd.f32 %v266, %v377
        %v379 = vpop.f32.mrb[0].mxu0
        %v380 = vpop.f32.mrb[0].mxu0
        %v381 = vpop.f32.mrb[0].mxu0
        %382 = vdwg.mxu0
        %v383 = vpack.c.bf16 %v378, %v378
        %v384 = vld [vmem:[#allocation3 + $0xc0] sm:$0xf]
        %v385 = vld [vmem:[#allocation3 + $0xc8] sm:$0xf]
        %v386 = vld [vmem:[#allocation3 + $0xd0] sm:$0xf]
        %v387 = vld [vmem:[#allocation3 + $0xd8] sm:$0xf]
        %v388 = vld [vmem:[%s3 + $0x1] sm:$0x1]
        %v389 = vlaneseq
        %v390 = vshrl.u32 %v389, 7
        %v391 = vsub.s32 0, %v390
        %v392 = vrot.slane %v388, %v391
        %v397 = vunpack.c.l.b16 %v384
        %v398 = vunpack.c.l.b16 %v385
        %v399 = vunpack.c.l.b16 %v386
        %v400 = vunpack.c.l.b16 %v387
        %v401 = vpack.c.b16 %v398, %v397
        %v402 = vpack.c.b16 %v400, %v399
        %vm405 = vcmask 261120
        %v407 = vsel %vm405, %v383, 0
        %409 = vmatprep.subr.bf16.mxu0 0
        %410 = vmatpush1.bf16.msra.mxu0 %v401
        %411 = vmatprep.subr.bf16.mxu0 0
        %412 = vmatpush1.bf16.msra.mxu0 %v402
        %413 = vmatprep.subr.bf16.mxu0 0
        %414 = vmatpush1.bf16.msra.mxu0 0
        %415 = vmatprep.subr.bf16.mxu0 0
        %416 = vmatpush1.bf16.msra.mxu0 0
        %417 = vmatprep.subr.bf16.mxu0 0
        %418 = vmatpush1.bf16.msra.mxu0 0
        %419 = vmatprep.subr.bf16.mxu0 0
        %420 = vmatpush1.bf16.msra.mxu0 0
        %421 = vmatprep.subr.bf16.mxu0 0
        %422 = vmatpush1.bf16.msra.mxu0 0
        %423 = vmatprep.subr.bf16.mxu0 0
        %424 = vmatpush1.bf16.msra.mxu0 0
        %425 = vmatprep.subr.bf16.mxu0 0
        %426 = vmatpush1.bf16.msra.mxu0 0
        %427 = vmatprep.subr.bf16.mxu0 0
        %428 = vmatpush1.bf16.msra.mxu0 0
        %429 = vmatprep.subr.bf16.mxu0 0
        %430 = vmatpush1.bf16.msra.mxu0 0
        %431 = vmatprep.subr.bf16.mxu0 0
        %432 = vmatpush1.bf16.msra.mxu0 0
        %433 = vmatprep.subr.bf16.mxu0 0
        %434 = vmatpush1.bf16.msra.mxu0 0
        %435 = vmatprep.subr.bf16.mxu0 0
        %436 = vmatpush1.bf16.msra.mxu0 0
        %437 = vmatprep.subr.bf16.mxu0 0
        %438 = vmatpush1.bf16.msra.mxu0 0
        %439 = vmatprep.subr.bf16.mxu0 0
        %440 = vmatpush1.bf16.msra.mxu0 0
        %441 = vmatprep.mubr.bf16.mxu0 0
        %442 = vmatmul.mubr.bf16.gmra.mrb[0].mxu0 %v407
        %v443 = vpop.f32.mrb[0].mxu0
        %v444 = vadd.f32 %v392, %v443
        %v445 = vpop.f32.mrb[0].mxu0
        %v446 = vpop.f32.mrb[0].mxu0
        %v447 = vpop.f32.mrb[0].mxu0
        %448 = vdwg.mxu0
        %v449 = vld [vmem:[%s226] sm:$0xff]
        %v450 = vld [vmem:[%s226 + $0x8] sm:$0x3f]
        %v451 = vlaneseq
        %v452 = vand.u32 %v451, 127
        %v453 = vadd.s32 %v452, 128
        %454 = vset.pattern.permute.xlu0 0
        %455 = vperm.xlu0 %454, %v449
        %v456 = vpop.permute.xlu0 %455
        %457 = vset.pattern.permute.xlu0 0
        %458 = vperm.xlu0 %457, %v450
        %v459 = vpop.permute.xlu0 %458
        %vm460 = vcmp.eq.s32.totalorder %v452, %v456
        %vm461 = vcmp.eq.s32.totalorder %v453, %v456
        %vm462 = vcmp.eq.s32.totalorder %v452, %v459
        %vm463 = vcmp.eq.s32.totalorder %v453, %v459
        %v464 = vsel %vm460, 1, 0
        %v465 = vsel %vm461, 1, 0
        %v466 = vsel %vm462, 1, 0
        %v467 = vsel %vm463, 1, 0
        %v468 = vcvt.s32.f32 %v464
        %v469 = vcvt.s32.f32 %v465
        %v470 = vcvt.s32.f32 %v466
        %v471 = vcvt.s32.f32 %v467
        %v472 = vpack.c.bf16 %v470, %v468
        %v473 = vpack.c.bf16 %v471, %v469
        %v474 = vld [vmem:[#allocation3 + $0xe0] sm:$0xf]
        %v475 = vld [vmem:[#allocation3 + $0xe8] sm:$0xf]
        %v476 = vld [vmem:[#allocation3 + $0xf0] sm:$0xf]
        %v477 = vld [vmem:[#allocation3 + $0xf8] sm:$0xf]
        %v478 = vld [vmem:[#allocation3 + $0x100] sm:$0xf]
        %v479 = vld [vmem:[#allocation3 + $0x108] sm:$0xf]
        %v480 = vld [vmem:[#allocation3 + $0x110] sm:$0xf]
        %v481 = vld [vmem:[#allocation3 + $0x118] sm:$0xf]
        %v482 = vld [vmem:[#allocation3 + $0x120] sm:$0xf]
        %v483 = vld [vmem:[#allocation3 + $0x128] sm:$0xf]
        %v484 = vld [vmem:[#allocation3 + $0x130] sm:$0xf]
        %v485 = vld [vmem:[#allocation3 + $0x138] sm:$0xf]
        %v486 = vld [vmem:[#allocation3 + $0x140] sm:$0xf]
        %v487 = vld [vmem:[#allocation3 + $0x148] sm:$0xf]
        %v488 = vld [vmem:[#allocation3 + $0x150] sm:$0xf]
        %v489 = vld [vmem:[#allocation3 + $0x158] sm:$0xf]
        %v490 = vld [vmem:[#allocation3 + $0x160] sm:$0xf]
        %v491 = vld [vmem:[#allocation3 + $0x168] sm:$0xf]
        %v492 = vld [vmem:[#allocation3 + $0x170] sm:$0xf]
        %v493 = vld [vmem:[#allocation3 + $0x178] sm:$0xf]
        %v494 = vld [vmem:[#allocation3 + $0x180] sm:$0xf]
        %v495 = vld [vmem:[#allocation3 + $0x188] sm:$0xf]
        %v496 = vld [vmem:[#allocation3 + $0x190] sm:$0xf]
        %v497 = vld [vmem:[#allocation3 + $0x198] sm:$0xf]
        %v498 = vld [vmem:[#allocation3 + $0x1a0] sm:$0xf]
        %v499 = vld [vmem:[#allocation3 + $0x1a8] sm:$0xf]
        %v500 = vld [vmem:[#allocation3 + $0x1b0] sm:$0xf]
        %v501 = vld [vmem:[#allocation3 + $0x1b8] sm:$0xf]
        %v502 = vld [vmem:[#allocation3 + $0x1c0] sm:$0xf]
        %v503 = vld [vmem:[#allocation3 + $0x1c8] sm:$0xf]
        %v504 = vld [vmem:[#allocation3 + $0x1d0] sm:$0xf]
        %v505 = vld [vmem:[#allocation3 + $0x1d8] sm:$0xf]
        %v538 = vunpack.c.l.b16 %v474
        %v539 = vunpack.c.l.b16 %v475
        %v540 = vunpack.c.l.b16 %v476
        %v541 = vunpack.c.l.b16 %v477
        %v542 = vunpack.c.l.b16 %v478
        %v543 = vunpack.c.l.b16 %v479
        %v544 = vunpack.c.l.b16 %v480
        %v545 = vunpack.c.l.b16 %v481
        %v546 = vunpack.c.l.b16 %v482
        %v547 = vunpack.c.l.b16 %v483
        %v548 = vunpack.c.l.b16 %v484
        %v549 = vunpack.c.l.b16 %v485
        %v550 = vunpack.c.l.b16 %v486
        %v551 = vunpack.c.l.b16 %v487
        %v552 = vunpack.c.l.b16 %v488
        %v553 = vunpack.c.l.b16 %v489
        %v554 = vunpack.c.l.b16 %v490
        %v555 = vunpack.c.l.b16 %v491
        %v556 = vunpack.c.l.b16 %v492
        %v557 = vunpack.c.l.b16 %v493
        %v558 = vunpack.c.l.b16 %v494
        %v559 = vunpack.c.l.b16 %v495
        %v560 = vunpack.c.l.b16 %v496
        %v561 = vunpack.c.l.b16 %v497
        %v562 = vunpack.c.l.b16 %v498
        %v563 = vunpack.c.l.b16 %v499
        %v564 = vunpack.c.l.b16 %v500
        %v565 = vunpack.c.l.b16 %v501
        %v566 = vunpack.c.l.b16 %v502
        %v567 = vunpack.c.l.b16 %v503
        %v568 = vunpack.c.l.b16 %v504
        %v569 = vunpack.c.l.b16 %v505
        %v570 = vpack.c.b16 %v539, %v538
        %v571 = vpack.c.b16 %v541, %v540
        %v572 = vpack.c.b16 %v543, %v542
        %v573 = vpack.c.b16 %v545, %v544
        %v574 = vpack.c.b16 %v547, %v546
        %v575 = vpack.c.b16 %v549, %v548
        %v576 = vpack.c.b16 %v551, %v550
        %v577 = vpack.c.b16 %v553, %v552
        %v578 = vpack.c.b16 %v555, %v554
        %v579 = vpack.c.b16 %v557, %v556
        %v580 = vpack.c.b16 %v559, %v558
        %v581 = vpack.c.b16 %v561, %v560
        %v582 = vpack.c.b16 %v563, %v562
        %v583 = vpack.c.b16 %v565, %v564
        %v584 = vpack.c.b16 %v567, %v566
        %v585 = vpack.c.b16 %v569, %v568
        %602 = vmatprep.subr.bf16.mxu0 0
        %603 = vmatpush1.bf16.msra.mxu0 %v570
        %604 = vmatprep.subr.bf16.mxu0 0
        %605 = vmatpush1.bf16.msra.mxu0 %v571
        %606 = vmatprep.subr.bf16.mxu0 0
        %607 = vmatpush1.bf16.msra.mxu0 %v572
        %608 = vmatprep.subr.bf16.mxu0 0
        %609 = vmatpush1.bf16.msra.mxu0 %v573
        %610 = vmatprep.subr.bf16.mxu0 0
        %611 = vmatpush1.bf16.msra.mxu0 %v574
        %612 = vmatprep.subr.bf16.mxu0 0
        %613 = vmatpush1.bf16.msra.mxu0 %v575
        %614 = vmatprep.subr.bf16.mxu0 0
        %615 = vmatpush1.bf16.msra.mxu0 %v576
        %616 = vmatprep.subr.bf16.mxu0 0
        %617 = vmatpush1.bf16.msra.mxu0 %v577
        %618 = vmatprep.subr.bf16.mxu0 0
        %619 = vmatpush1.bf16.msra.mxu0 %v578
        %620 = vmatprep.subr.bf16.mxu0 0
        %621 = vmatpush1.bf16.msra.mxu0 %v579
        %622 = vmatprep.subr.bf16.mxu0 0
        %623 = vmatpush1.bf16.msra.mxu0 %v580
        %624 = vmatprep.subr.bf16.mxu0 0
        %625 = vmatpush1.bf16.msra.mxu0 %v581
        %626 = vmatprep.subr.bf16.mxu0 0
        %627 = vmatpush1.bf16.msra.mxu0 %v582
        %628 = vmatprep.subr.bf16.mxu0 0
        %629 = vmatpush1.bf16.msra.mxu0 %v583
        %630 = vmatprep.subr.bf16.mxu0 0
        %631 = vmatpush1.bf16.msra.mxu0 %v584
        %632 = vmatprep.subr.bf16.mxu0 0
        %633 = vmatpush1.bf16.msra.mxu0 %v585
        %634 = vmatprep.mubr.bf16.mxu0 %v473
        %635 = vmatmul.mubr.bf16.gmra.mrb[0].mxu0 %v472
        %v636 = vpop.f32.mrb[0].mxu0
        %v637 = vadd.f32 0.0, %v636
        %v638 = vpop.f32.mrb[0].mxu0
        %v639 = vpop.f32.mrb[0].mxu0
        %v640 = vadd.f32 0.0, %v639
        %v641 = vpop.f32.mrb[0].mxu0
        %642 = vdwg.mxu0
        %643 = vst.msk [vmem:[#allocation2] sm:$0xff] %vm339, 0.0
        %644 = vst.msk [vmem:[#allocation2 + $0x8] sm:$0xff] %vm339, 0.0
        %645 = vst.msk [vmem:[#allocation2 + $0x10] sm:$0xff] %vm339, 0.0
        %vm646 = vcmask 519168
        %647 = vst.msk [vmem:[#allocation2] sm:$0xf] %vm646, %v444
        %648 = vst.msk [vmem:[#allocation2 + $0x8] sm:$0xff] %vm339, %v637
        %vm649 = vcmask 521216
        %650 = vst.msk [vmem:[#allocation2 + $0x10] sm:$0x3f] %vm649, %v640
        %v651 = vld [vmem:[#allocation2] sm:$0xff]
        %v652 = vld [vmem:[#allocation2 + $0x8] sm:$0xff]
        %v653 = vld [vmem:[#allocation2 + $0x10] sm:$0xff]
        %v654 = vlaneseq
        %v655 = vshrl.u32 %v654, 7
        %v656 = vadd.s32 %v655, 8
        %v657 = vadd.s32 %v655, 16
        %vm658 = vcmp.lt.s32.totalorder %v452, 4
        %vm659 = vcmp.ge.s32.totalorder %v452, 8
        %vm660 = vcmp.lt.s32.totalorder %v452, 22
        %vm661 = vmand %vm659, %vm660
        %vm662 = vmor %vm658, %vm661
        %vm663 = vcmp.le.s32.totalorder %v452, %v655
        %vm664 = vcmp.le.s32.totalorder %v452, %v656
        %vm665 = vcmp.le.s32.totalorder %v452, %v657
        %vm666 = vmand %vm663, %vm662
        %vm667 = vmand %vm664, %vm662
        %vm668 = vmand %vm665, %vm662
        %v669 = vsel %vm666, 0.0, -1e+30
        %v670 = vsel %vm667, 0.0, -1e+30
        %v671 = vsel %vm668, 0.0, -1e+30
        %v672 = vmul.f32 %v651, %v651
        %v673 = vmul.f32 %v652, %v652
        %v674 = vmul.f32 %v653, %v653
        %v675 = vsel %vm339, %v672, 0.0
        %676 = vadd.xlane.f32.xlu0 %v675
        %v677 = vpop.xlane.xlu0 %676
        %v678 = vsel %vm339, %v673, 0.0
        %679 = vadd.xlane.f32.xlu0 %v678
        %v680 = vpop.xlane.xlu0 %679
        %v681 = vsel %vm339, %v674, 0.0
        %682 = vadd.xlane.f32.xlu0 %v681
        %v683 = vpop.xlane.xlu0 %682
        %v684 = vrcp.pop 64.0
        %v685 = vmul.f32 %v677, %v684
        %v686 = vmul.f32 %v680, %v684
        %v687 = vmul.f32 %v683, %v684
        %v688 = vadd.f32 %v685, 1e-06
        %v689 = vadd.f32 %v686, 1e-06
        %v690 = vadd.f32 %v687, 1e-06
        %v691 = vrsqrt.pop %v688
        %v692 = vrsqrt.pop %v689
        %v693 = vrsqrt.pop %v690
        %v694 = vmul.f32 %v651, %v691
        %v695 = vmul.f32 %v652, %v692
        %v696 = vmul.f32 %v653, %v693
        %v697 = vpack.c.bf16 %v695, %v694
        %v698 = vpack.c.bf16 %v696, %v696
        %v699 = vld [vmem:[#allocation3 + $0x1e0] sm:$0xf]
        %v700 = vld [vmem:[#allocation3 + $0x1e8] sm:$0xf]
        %v701 = vld [vmem:[#allocation3 + $0x1f0] sm:$0xf]
        %v702 = vld [vmem:[#allocation3 + $0x1f8] sm:$0xf]
        %v703 = vld [vmem:[#allocation3 + $0x200] sm:$0xf]
        %v704 = vld [vmem:[#allocation3 + $0x208] sm:$0xf]
        %v705 = vld [vmem:[#allocation3 + $0x210] sm:$0xf]
        %v706 = vld [vmem:[#allocation3 + $0x218] sm:$0xf]
        %v715 = vunpack.c.l.b16 %v699
        %v716 = vunpack.c.l.b16 %v700
        %v717 = vunpack.c.l.b16 %v701
        %v718 = vunpack.c.l.b16 %v702
        %v719 = vunpack.c.l.b16 %v703
        %v720 = vunpack.c.l.b16 %v704
        %v721 = vunpack.c.l.b16 %v705
        %v722 = vunpack.c.l.b16 %v706
        %v723 = vpack.c.b16 %v716, %v715
        %v724 = vpack.c.b16 %v718, %v717
        %v725 = vpack.c.b16 %v720, %v719
        %v726 = vpack.c.b16 %v722, %v721
        %v732 = vsel %vm339, %v697, 0
        %v735 = vsel %vm339, %v698, 0
        %737 = vmatprep.subr.bf16.mxu0 0
        %738 = vmatpush1.bf16.msra.mxu0 %v723
        %739 = vmatprep.subr.bf16.mxu0 0
        %740 = vmatpush1.bf16.msra.mxu0 %v724
        %741 = vmatprep.subr.bf16.mxu0 0
        %742 = vmatpush1.bf16.msra.mxu0 %v725
        %743 = vmatprep.subr.bf16.mxu0 0
        %744 = vmatpush1.bf16.msra.mxu0 %v726
        %745 = vmatprep.subr.bf16.mxu0 0
        %746 = vmatpush1.bf16.msra.mxu0 0
        %747 = vmatprep.subr.bf16.mxu0 0
        %748 = vmatpush1.bf16.msra.mxu0 0
        %749 = vmatprep.subr.bf16.mxu0 0
        %750 = vmatpush1.bf16.msra.mxu0 0
        %751 = vmatprep.subr.bf16.mxu0 0
        %752 = vmatpush1.bf16.msra.mxu0 0
        %753 = vmatprep.subr.bf16.mxu0 0
        %754 = vmatpush1.bf16.msra.mxu0 0
        %755 = vmatprep.subr.bf16.mxu0 0
        %756 = vmatpush1.bf16.msra.mxu0 0
        %757 = vmatprep.subr.bf16.mxu0 0
        %758 = vmatpush1.bf16.msra.mxu0 0
        %759 = vmatprep.subr.bf16.mxu0 0
        %760 = vmatpush1.bf16.msra.mxu0 0
        %761 = vmatprep.subr.bf16.mxu0 0
        %762 = vmatpush1.bf16.msra.mxu0 0
        %763 = vmatprep.subr.bf16.mxu0 0
        %764 = vmatpush1.bf16.msra.mxu0 0
        %765 = vmatprep.subr.bf16.mxu0 0
        %766 = vmatpush1.bf16.msra.mxu0 0
        %767 = vmatprep.subr.bf16.mxu0 0
        %768 = vmatpush1.bf16.msra.mxu0 0
        %769 = vmatprep.mubr.bf16.mxu0 0
        %770 = vmatmul.mubr.bf16.gmra.mrb[0].mxu0 %v732
        %v771 = vpop.f32.mrb[0].mxu0
        %v772 = vadd.f32 0.0, %v771
        %v773 = vpop.f32.mrb[0].mxu0
        %v774 = vpop.f32.mrb[0].mxu0
        %v775 = vadd.f32 0.0, %v774
        %v776 = vpop.f32.mrb[0].mxu0
        %777 = vmatprep.mubr.bf16.mxu0 0
        %778 = vmatmul.mubr.bf16.gmra.mrb[0].mxu0 %v735
        %v779 = vpop.f32.mrb[0].mxu0
        %v780 = vadd.f32 0.0, %v779
        %v781 = vpop.f32.mrb[0].mxu0
        %v782 = vpop.f32.mrb[0].mxu0
        %v783 = vpop.f32.mrb[0].mxu0
        %784 = vdwg.mxu0
        %v785 = vpack.c.bf16 %v775, %v772
        %v786 = vpack.c.bf16 %v780, %v780
        %v787 = vld [vmem:[#allocation3 + $0x260] sm:$0xf]
        %v788 = vld [vmem:[#allocation3 + $0x268] sm:$0xf]
        %v789 = vld [vmem:[#allocation3 + $0x270] sm:$0xf]
        %v790 = vld [vmem:[#allocation3 + $0x278] sm:$0xf]
        %v791 = vld [vmem:[#allocation3 + $0x280] sm:$0xf]
        %v792 = vld [vmem:[#allocation3 + $0x288] sm:$0xf]
        %v793 = vld [vmem:[#allocation3 + $0x290] sm:$0xf]
        %v794 = vld [vmem:[#allocation3 + $0x298] sm:$0xf]
        %v803 = vunpack.c.l.b16 %v787
        %v804 = vunpack.c.l.b16 %v788
        %v805 = vunpack.c.l.b16 %v789
        %v806 = vunpack.c.l.b16 %v790
        %v807 = vunpack.c.l.b16 %v791
        %v808 = vunpack.c.l.b16 %v792
        %v809 = vunpack.c.l.b16 %v793
        %v810 = vunpack.c.l.b16 %v794
        %v811 = vpack.c.b16 %v804, %v803
        %v812 = vpack.c.b16 %v806, %v805
        %v813 = vpack.c.b16 %v808, %v807
        %v814 = vpack.c.b16 %v810, %v809
        %819 = vmatprep.subr.bf16.mxu0 0
        %820 = vmatpush1.bf16.msra.mxu0 %v811
        %821 = vmatprep.subr.bf16.mxu0 0
        %822 = vmatpush1.bf16.msra.mxu0 %v812
        %823 = vmatprep.subr.bf16.mxu0 0
        %824 = vmatpush1.bf16.msra.mxu0 %v813
        %825 = vmatprep.subr.bf16.mxu0 0
        %826 = vmatpush1.bf16.msra.mxu0 %v814
        %827 = vmatprep.subr.bf16.mxu0 0
        %828 = vmatpush1.bf16.msra.mxu0 0
        %829 = vmatprep.subr.bf16.mxu0 0
        %830 = vmatpush1.bf16.msra.mxu0 0
        %831 = vmatprep.subr.bf16.mxu0 0
        %832 = vmatpush1.bf16.msra.mxu0 0
        %833 = vmatprep.subr.bf16.mxu0 0
        %834 = vmatpush1.bf16.msra.mxu0 0
        %835 = vmatprep.subr.bf16.mxu0 0
        %836 = vmatpush1.bf16.msra.mxu0 0
        %837 = vmatprep.subr.bf16.mxu0 0
        %838 = vmatpush1.bf16.msra.mxu0 0
        %839 = vmatprep.subr.bf16.mxu0 0
        %840 = vmatpush1.bf16.msra.mxu0 0
        %841 = vmatprep.subr.bf16.mxu0 0
        %842 = vmatpush1.bf16.msra.mxu0 0
        %843 = vmatprep.subr.bf16.mxu0 0
        %844 = vmatpush1.bf16.msra.mxu0 0
        %845 = vmatprep.subr.bf16.mxu0 0
        %846 = vmatpush1.bf16.msra.mxu0 0
        %847 = vmatprep.subr.bf16.mxu0 0
        %848 = vmatpush1.bf16.msra.mxu0 0
        %849 = vmatprep.subr.bf16.mxu0 0
        %850 = vmatpush1.bf16.msra.mxu0 0
        %851 = vmatprep.mubr.bf16.mxu0 0
        %852 = vmatmul.mubr.bf16.gmra.mrb[0].mxu0 %v732
        %v853 = vpop.f32.mrb[0].mxu0
        %v854 = vadd.f32 0.0, %v853
        %v855 = vpop.f32.mrb[0].mxu0
        %v856 = vpop.f32.mrb[0].mxu0
        %v857 = vadd.f32 0.0, %v856
        %v858 = vpop.f32.mrb[0].mxu0
        %859 = vmatprep.mubr.bf16.mxu0 0
        %860 = vmatmul.mubr.bf16.gmra.mrb[0].mxu0 %v735
        %v861 = vpop.f32.mrb[0].mxu0
        %v862 = vadd.f32 0.0, %v861
        %v863 = vpop.f32.mrb[0].mxu0
        %v864 = vpop.f32.mrb[0].mxu0
        %v865 = vpop.f32.mrb[0].mxu0
        %866 = vdwg.mxu0
        %v867 = vpack.c.bf16 %v857, %v854
        %v868 = vpack.c.bf16 %v862, %v862
        %v869 = vld [vmem:[#allocation3 + $0x2e0] sm:$0xf]
        %v870 = vld [vmem:[#allocation3 + $0x2e8] sm:$0xf]
        %v871 = vld [vmem:[#allocation3 + $0x2f0] sm:$0xf]
        %v872 = vld [vmem:[#allocation3 + $0x2f8] sm:$0xf]
        %v873 = vld [vmem:[#allocation3 + $0x300] sm:$0xf]
        %v874 = vld [vmem:[#allocation3 + $0x308] sm:$0xf]
        %v875 = vld [vmem:[#allocation3 + $0x310] sm:$0xf]
        %v876 = vld [vmem:[#allocation3 + $0x318] sm:$0xf]
        %v885 = vunpack.c.l.b16 %v869
        %v886 = vunpack.c.l.b16 %v870
        %v887 = vunpack.c.l.b16 %v871
        %v888 = vunpack.c.l.b16 %v872
        %v889 = vunpack.c.l.b16 %v873
        %v890 = vunpack.c.l.b16 %v874
        %v891 = vunpack.c.l.b16 %v875
        %v892 = vunpack.c.l.b16 %v876
        %v893 = vpack.c.b16 %v886, %v885
        %v894 = vpack.c.b16 %v888, %v887
        %v895 = vpack.c.b16 %v890, %v889
        %v896 = vpack.c.b16 %v892, %v891
        %901 = vmatprep.subr.bf16.mxu0 0
        %902 = vmatpush1.bf16.msra.mxu0 %v893
        %903 = vmatprep.subr.bf16.mxu0 0
        %904 = vmatpush1.bf16.msra.mxu0 %v894
        %905 = vmatprep.subr.bf16.mxu0 0
        %906 = vmatpush1.bf16.msra.mxu0 %v895
        %907 = vmatprep.subr.bf16.mxu0 0
        %908 = vmatpush1.bf16.msra.mxu0 %v896
        %909 = vmatprep.subr.bf16.mxu0 0
        %910 = vmatpush1.bf16.msra.mxu0 0
        %911 = vmatprep.subr.bf16.mxu0 0
        %912 = vmatpush1.bf16.msra.mxu0 0
        %913 = vmatprep.subr.bf16.mxu0 0
        %914 = vmatpush1.bf16.msra.mxu0 0
        %915 = vmatprep.subr.bf16.mxu0 0
        %916 = vmatpush1.bf16.msra.mxu0 0
        %917 = vmatprep.subr.bf16.mxu0 0
        %918 = vmatpush1.bf16.msra.mxu0 0
        %919 = vmatprep.subr.bf16.mxu0 0
        %920 = vmatpush1.bf16.msra.mxu0 0
        %921 = vmatprep.subr.bf16.mxu0 0
        %922 = vmatpush1.bf16.msra.mxu0 0
        %923 = vmatprep.subr.bf16.mxu0 0
        %924 = vmatpush1.bf16.msra.mxu0 0
        %925 = vmatprep.subr.bf16.mxu0 0
        %926 = vmatpush1.bf16.msra.mxu0 0
        %927 = vmatprep.subr.bf16.mxu0 0
        %928 = vmatpush1.bf16.msra.mxu0 0
        %929 = vmatprep.subr.bf16.mxu0 0
        %930 = vmatpush1.bf16.msra.mxu0 0
        %931 = vmatprep.subr.bf16.mxu0 0
        %932 = vmatpush1.bf16.msra.mxu0 0
        %933 = vmatprep.mubr.bf16.mxu0 0
        %934 = vmatmul.mubr.bf16.gmra.mrb[0].mxu0 %v732
        %v935 = vpop.f32.mrb[0].mxu0
        %v936 = vadd.f32 0.0, %v935
        %v937 = vpop.f32.mrb[0].mxu0
        %v938 = vpop.f32.mrb[0].mxu0
        %v939 = vadd.f32 0.0, %v938
        %v940 = vpop.f32.mrb[0].mxu0
        %941 = vmatprep.mubr.bf16.mxu0 0
        %942 = vmatmul.mubr.bf16.gmra.mrb[0].mxu0 %v735
        %v943 = vpop.f32.mrb[0].mxu0
        %v944 = vadd.f32 0.0, %v943
        %v945 = vpop.f32.mrb[0].mxu0
        %v946 = vpop.f32.mrb[0].mxu0
        %v947 = vpop.f32.mrb[0].mxu0
        %948 = vdwg.mxu0
        %v949 = vpack.c.bf16 %v939, %v936
        %v950 = vpack.c.bf16 %v944, %v944
        %v952 = vsel %vm405, %v785, 0
        %v955 = vsel %vm405, %v786, 0
        %v958 = vsel %vm405, %v867, 0
        %v961 = vsel %vm405, %v868, 0
        %963 = vmatprep.subr.bf16.mxu0 0
        %964 = vmatpush1.bf16.xpose.msra.mxu0 %v958
        %965 = vmatprep.subr.bf16.mxu0 0
        %966 = vmatpush1.bf16.xpose.msra.mxu0 %v961
        %967 = vmatprep.subr.bf16.mxu0 0
        %968 = vmatpush1.bf16.xpose.msra.mxu0 0
        %969 = vmatprep.subr.bf16.mxu0 0
        %970 = vmatpush1.bf16.xpose.msra.mxu0 0
        %971 = vmatprep.subr.bf16.mxu0 0
        %972 = vmatpush1.bf16.xpose.msra.mxu0 0
        %973 = vmatprep.subr.bf16.mxu0 0
        %974 = vmatpush1.bf16.xpose.msra.mxu0 0
        %975 = vmatprep.subr.bf16.mxu0 0
        %976 = vmatpush1.bf16.xpose.msra.mxu0 0
        %977 = vmatprep.subr.bf16.mxu0 0
        %978 = vmatpush1.bf16.xpose.msra.mxu0 0
        %979 = vmatprep.subr.bf16.mxu0 0
        %980 = vmatpush1.bf16.xpose.msra.mxu0 0
        %981 = vmatprep.subr.bf16.mxu0 0
        %982 = vmatpush1.bf16.xpose.msra.mxu0 0
        %983 = vmatprep.subr.bf16.mxu0 0
        %984 = vmatpush1.bf16.xpose.msra.mxu0 0
        %985 = vmatprep.subr.bf16.mxu0 0
        %986 = vmatpush1.bf16.xpose.msra.mxu0 0
        %987 = vmatprep.subr.bf16.mxu0 0
        %988 = vmatpush1.bf16.xpose.msra.mxu0 0
        %989 = vmatprep.subr.bf16.mxu0 0
        %990 = vmatpush1.bf16.xpose.msra.mxu0 0
        %991 = vmatprep.subr.bf16.mxu0 0
        %992 = vmatpush1.bf16.xpose.msra.mxu0 0
        %993 = vmatprep.subr.bf16.mxu0 0
        %994 = vmatpush1.bf16.xpose.msra.mxu0 0
        %995 = vmatprep.mubr.bf16.mxu0 0
        %996 = vmatmul.mubr.bf16.gmra.mrb[0].mxu0 %v952
        %v997 = vpop.f32.mrb[0].mxu0
        %v998 = vadd.f32 %v669, %v997
        %v999 = vpop.f32.mrb[0].mxu0
        %v1000 = vpop.f32.mrb[0].mxu0
        %v1001 = vadd.f32 %v670, %v1000
        %v1002 = vpop.f32.mrb[0].mxu0
        %1003 = vmatprep.mubr.bf16.mxu0 0
        %1004 = vmatmul.mubr.bf16.gmra.mrb[0].mxu0 %v955
        %v1005 = vpop.f32.mrb[0].mxu0
        %v1006 = vadd.f32 %v671, %v1005
        %v1007 = vpop.f32.mrb[0].mxu0
        %v1008 = vpop.f32.mrb[0].mxu0
        %v1009 = vpop.f32.mrb[0].mxu0
        %1010 = vdwg.mxu0
        %vm1011 = vcmask 195584
        %v1012 = vsel %vm1011, %v998, -inf
        %1013 = vmax.xlane.f32.xlu0 %v1012
        %v1014 = vpop.xlane.xlu0 %1013
        %v1015 = vsel %vm1011, %v1001, -inf
        %1016 = vmax.xlane.f32.xlu0 %v1015
        %v1017 = vpop.xlane.xlu0 %1016
        %v1018 = vsel %vm1011, %v1006, -inf
        %1019 = vmax.xlane.f32.xlu0 %v1018
        %v1020 = vpop.xlane.xlu0 %1019
        %v1021 = vsub.f32 %v998, %v1014
        %v1022 = vsub.f32 %v1001, %v1017
        %v1023 = vsub.f32 %v1006, %v1020
        %v1024 = vmul.f32 %v1021, 1.442695
        %v1025 = vpow.pop %v1024
        %v1026 = vmul.f32 %v1022, 1.442695
        %v1027 = vpow.pop %v1026
        %v1028 = vmul.f32 %v1023, 1.442695
        %v1029 = vpow.pop %v1028
        %v1030 = vsel %vm1011, %v1025, 0.0
        %1031 = vadd.xlane.f32.xlu0 %v1030
        %v1032 = vpop.xlane.xlu0 %1031
        %v1033 = vsel %vm1011, %v1027, 0.0
        %1034 = vadd.xlane.f32.xlu0 %v1033
        %v1035 = vpop.xlane.xlu0 %1034
        %v1036 = vsel %vm1011, %v1029, 0.0
        %1037 = vadd.xlane.f32.xlu0 %v1036
        %v1038 = vpop.xlane.xlu0 %1037
        %v1039 = vrcp.pop %v1032
        %v1040 = vmul.f32 %v1025, %v1039
        %v1041 = vrcp.pop %v1035
        %v1042 = vmul.f32 %v1027, %v1041
        %v1043 = vrcp.pop %v1038
        %v1044 = vmul.f32 %v1029, %v1043
        %v1045 = vpack.c.bf16 %v1042, %v1040
        %v1046 = vpack.c.bf16 %v1044, %v1044
        %v1048 = vsel %vm1011, %v1045, 0
        %v1051 = vsel %vm1011, %v1046, 0
        %vm1053 = vcmask 1043456
        %v1055 = vsel %vm1053, %v950, 0
        %1057 = vmatprep.subr.bf16.mxu0 0
        %1058 = vmatpush1.bf16.msra.mxu0 %v949
        %1059 = vmatprep.subr.bf16.mxu0 0
        %1060 = vmatpush1.bf16.msra.mxu0 %v1055
        %1061 = vmatprep.subr.bf16.mxu0 0
        %1062 = vmatpush1.bf16.msra.mxu0 0
        %1063 = vmatprep.subr.bf16.mxu0 0
        %1064 = vmatpush1.bf16.msra.mxu0 0
        %1065 = vmatprep.subr.bf16.mxu0 0
        %1066 = vmatpush1.bf16.msra.mxu0 0
        %1067 = vmatprep.subr.bf16.mxu0 0
        %1068 = vmatpush1.bf16.msra.mxu0 0
        %1069 = vmatprep.subr.bf16.mxu0 0
        %1070 = vmatpush1.bf16.msra.mxu0 0
        %1071 = vmatprep.subr.bf16.mxu0 0
        %1072 = vmatpush1.bf16.msra.mxu0 0
        %1073 = vmatprep.subr.bf16.mxu0 0
        %1074 = vmatpush1.bf16.msra.mxu0 0
        %1075 = vmatprep.subr.bf16.mxu0 0
        %1076 = vmatpush1.bf16.msra.mxu0 0
        %1077 = vmatprep.subr.bf16.mxu0 0
        %1078 = vmatpush1.bf16.msra.mxu0 0
        %1079 = vmatprep.subr.bf16.mxu0 0
        %1080 = vmatpush1.bf16.msra.mxu0 0
        %1081 = vmatprep.subr.bf16.mxu0 0
        %1082 = vmatpush1.bf16.msra.mxu0 0
        %1083 = vmatprep.subr.bf16.mxu0 0
        %1084 = vmatpush1.bf16.msra.mxu0 0
        %1085 = vmatprep.subr.bf16.mxu0 0
        %1086 = vmatpush1.bf16.msra.mxu0 0
        %1087 = vmatprep.subr.bf16.mxu0 0
        %1088 = vmatpush1.bf16.msra.mxu0 0
        %1089 = vmatprep.mubr.bf16.mxu0 0
        %1090 = vmatmul.mubr.bf16.gmra.mrb[0].mxu0 %v1048
        %v1091 = vpop.f32.mrb[0].mxu0
        %v1092 = vadd.f32 0.0, %v1091
        %v1093 = vpop.f32.mrb[0].mxu0
        %v1094 = vpop.f32.mrb[0].mxu0
        %v1095 = vadd.f32 0.0, %v1094
        %v1096 = vpop.f32.mrb[0].mxu0
        %1097 = vmatprep.mubr.bf16.mxu0 0
        %1098 = vmatmul.mubr.bf16.gmra.mrb[0].mxu0 %v1051
        %v1099 = vpop.f32.mrb[0].mxu0
        %v1100 = vadd.f32 0.0, %v1099
        %v1101 = vpop.f32.mrb[0].mxu0
        %v1102 = vpop.f32.mrb[0].mxu0
        %v1103 = vpop.f32.mrb[0].mxu0
        %1104 = vdwg.mxu0
        %v1105 = vpack.c.bf16 %v1095, %v1092
        %v1106 = vpack.c.bf16 %v1100, %v1100
        %v1107 = vld [vmem:[#allocation3 + $0x360] sm:$0xf]
        %v1108 = vld [vmem:[#allocation3 + $0x368] sm:$0xf]
        %v1109 = vld [vmem:[#allocation3 + $0x370] sm:$0xf]
        %v1110 = vld [vmem:[#allocation3 + $0x378] sm:$0xf]
        %v1111 = vld [vmem:[#allocation3 + $0x220] sm:$0xf]
        %v1112 = vld [vmem:[#allocation3 + $0x228] sm:$0xf]
        %v1113 = vld [vmem:[#allocation3 + $0x230] sm:$0xf]
        %v1114 = vld [vmem:[#allocation3 + $0x238] sm:$0xf]
        %v1115 = vld [vmem:[#allocation3 + $0x240] sm:$0xf]
        %v1116 = vld [vmem:[#allocation3 + $0x248] sm:$0xf]
        %v1117 = vld [vmem:[#allocation3 + $0x250] sm:$0xf]
        %v1118 = vld [vmem:[#allocation3 + $0x258] sm:$0xf]
        %v1127 = vunpack.c.l.b16 %v1111
        %v1128 = vunpack.c.l.b16 %v1112
        %v1129 = vunpack.c.l.b16 %v1113
        %v1130 = vunpack.c.l.b16 %v1114
        %v1131 = vunpack.c.l.b16 %v1115
        %v1132 = vunpack.c.l.b16 %v1116
        %v1133 = vunpack.c.l.b16 %v1117
        %v1134 = vunpack.c.l.b16 %v1118
        %v1135 = vpack.c.b16 %v1128, %v1127
        %v1136 = vpack.c.b16 %v1130, %v1129
        %v1137 = vpack.c.b16 %v1132, %v1131
        %v1138 = vpack.c.b16 %v1134, %v1133
        %1143 = vmatprep.subr.bf16.mxu0 0
        %1144 = vmatpush1.bf16.msra.mxu0 %v1135
        %1145 = vmatprep.subr.bf16.mxu0 0
        %1146 = vmatpush1.bf16.msra.mxu0 %v1136
        %1147 = vmatprep.subr.bf16.mxu0 0
        %1148 = vmatpush1.bf16.msra.mxu0 %v1137
        %1149 = vmatprep.subr.bf16.mxu0 0
        %1150 = vmatpush1.bf16.msra.mxu0 %v1138
        %1151 = vmatprep.subr.bf16.mxu0 0
        %1152 = vmatpush1.bf16.msra.mxu0 0
        %1153 = vmatprep.subr.bf16.mxu0 0
        %1154 = vmatpush1.bf16.msra.mxu0 0
        %1155 = vmatprep.subr.bf16.mxu0 0
        %1156 = vmatpush1.bf16.msra.mxu0 0
        %1157 = vmatprep.subr.bf16.mxu0 0
        %1158 = vmatpush1.bf16.msra.mxu0 0
        %1159 = vmatprep.subr.bf16.mxu0 0
        %1160 = vmatpush1.bf16.msra.mxu0 0
        %1161 = vmatprep.subr.bf16.mxu0 0
        %1162 = vmatpush1.bf16.msra.mxu0 0
        %1163 = vmatprep.subr.bf16.mxu0 0
        %1164 = vmatpush1.bf16.msra.mxu0 0
        %1165 = vmatprep.subr.bf16.mxu0 0
        %1166 = vmatpush1.bf16.msra.mxu0 0
        %1167 = vmatprep.subr.bf16.mxu0 0
        %1168 = vmatpush1.bf16.msra.mxu0 0
        %1169 = vmatprep.subr.bf16.mxu0 0
        %1170 = vmatpush1.bf16.msra.mxu0 0
        %1171 = vmatprep.subr.bf16.mxu0 0
        %1172 = vmatpush1.bf16.msra.mxu0 0
        %1173 = vmatprep.subr.bf16.mxu0 0
        %1174 = vmatpush1.bf16.msra.mxu0 0
        %1175 = vmatprep.mubr.bf16.mxu0 0
        %1176 = vmatmul.mubr.bf16.gmra.mrb[0].mxu0 %v732
        %v1177 = vpop.f32.mrb[0].mxu0
        %v1178 = vadd.f32 0.0, %v1177
        %v1179 = vpop.f32.mrb[0].mxu0
        %v1180 = vpop.f32.mrb[0].mxu0
        %v1181 = vadd.f32 0.0, %v1180
        %v1182 = vpop.f32.mrb[0].mxu0
        %1183 = vmatprep.mubr.bf16.mxu0 0
        %1184 = vmatmul.mubr.bf16.gmra.mrb[0].mxu0 %v735
        %v1185 = vpop.f32.mrb[0].mxu0
        %v1186 = vadd.f32 0.0, %v1185
        %v1187 = vpop.f32.mrb[0].mxu0
        %v1188 = vpop.f32.mrb[0].mxu0
        %v1189 = vpop.f32.mrb[0].mxu0
        %1190 = vdwg.mxu0
        %v1191 = vpack.c.bf16 %v1181, %v1178
        %v1192 = vpack.c.bf16 %v1186, %v1186
        %v1193 = vld [vmem:[#allocation3 + $0x2a0] sm:$0xf]
        %v1194 = vld [vmem:[#allocation3 + $0x2a8] sm:$0xf]
        %v1195 = vld [vmem:[#allocation3 + $0x2b0] sm:$0xf]
        %v1196 = vld [vmem:[#allocation3 + $0x2b8] sm:$0xf]
        %v1197 = vld [vmem:[#allocation3 + $0x2c0] sm:$0xf]
        %v1198 = vld [vmem:[#allocation3 + $0x2c8] sm:$0xf]
        %v1199 = vld [vmem:[#allocation3 + $0x2d0] sm:$0xf]
        %v1200 = vld [vmem:[#allocation3 + $0x2d8] sm:$0xf]
        %v1209 = vunpack.c.l.b16 %v1193
        %v1210 = vunpack.c.l.b16 %v1194
        %v1211 = vunpack.c.l.b16 %v1195
        %v1212 = vunpack.c.l.b16 %v1196
        %v1213 = vunpack.c.l.b16 %v1197
        %v1214 = vunpack.c.l.b16 %v1198
        %v1215 = vunpack.c.l.b16 %v1199
        %v1216 = vunpack.c.l.b16 %v1200
        %v1217 = vpack.c.b16 %v1210, %v1209
        %v1218 = vpack.c.b16 %v1212, %v1211
        %v1219 = vpack.c.b16 %v1214, %v1213
        %v1220 = vpack.c.b16 %v1216, %v1215
        %1225 = vmatprep.subr.bf16.mxu0 0
        %1226 = vmatpush1.bf16.msra.mxu0 %v1217
        %1227 = vmatprep.subr.bf16.mxu0 0
        %1228 = vmatpush1.bf16.msra.mxu0 %v1218
        %1229 = vmatprep.subr.bf16.mxu0 0
        %1230 = vmatpush1.bf16.msra.mxu0 %v1219
        %1231 = vmatprep.subr.bf16.mxu0 0
        %1232 = vmatpush1.bf16.msra.mxu0 %v1220
        %1233 = vmatprep.subr.bf16.mxu0 0
        %1234 = vmatpush1.bf16.msra.mxu0 0
        %1235 = vmatprep.subr.bf16.mxu0 0
        %1236 = vmatpush1.bf16.msra.mxu0 0
        %1237 = vmatprep.subr.bf16.mxu0 0
        %1238 = vmatpush1.bf16.msra.mxu0 0
        %1239 = vmatprep.subr.bf16.mxu0 0
        %1240 = vmatpush1.bf16.msra.mxu0 0
        %1241 = vmatprep.subr.bf16.mxu0 0
        %1242 = vmatpush1.bf16.msra.mxu0 0
        %1243 = vmatprep.subr.bf16.mxu0 0
        %1244 = vmatpush1.bf16.msra.mxu0 0
        %1245 = vmatprep.subr.bf16.mxu0 0
        %1246 = vmatpush1.bf16.msra.mxu0 0
        %1247 = vmatprep.subr.bf16.mxu0 0
        %1248 = vmatpush1.bf16.msra.mxu0 0
        %1249 = vmatprep.subr.bf16.mxu0 0
        %1250 = vmatpush1.bf16.msra.mxu0 0
        %1251 = vmatprep.subr.bf16.mxu0 0
        %1252 = vmatpush1.bf16.msra.mxu0 0
        %1253 = vmatprep.subr.bf16.mxu0 0
        %1254 = vmatpush1.bf16.msra.mxu0 0
        %1255 = vmatprep.subr.bf16.mxu0 0
        %1256 = vmatpush1.bf16.msra.mxu0 0
        %1257 = vmatprep.mubr.bf16.mxu0 0
        %1258 = vmatmul.mubr.bf16.gmra.mrb[0].mxu0 %v732
        %v1259 = vpop.f32.mrb[0].mxu0
        %v1260 = vadd.f32 0.0, %v1259
        %v1261 = vpop.f32.mrb[0].mxu0
        %v1262 = vpop.f32.mrb[0].mxu0
        %v1263 = vadd.f32 0.0, %v1262
        %v1264 = vpop.f32.mrb[0].mxu0
        %1265 = vmatprep.mubr.bf16.mxu0 0
        %1266 = vmatmul.mubr.bf16.gmra.mrb[0].mxu0 %v735
        %v1267 = vpop.f32.mrb[0].mxu0
        %v1268 = vadd.f32 0.0, %v1267
        %v1269 = vpop.f32.mrb[0].mxu0
        %v1270 = vpop.f32.mrb[0].mxu0
        %v1271 = vpop.f32.mrb[0].mxu0
        %1272 = vdwg.mxu0
        %v1273 = vpack.c.bf16 %v1263, %v1260
        %v1274 = vpack.c.bf16 %v1268, %v1268
        %v1275 = vld [vmem:[#allocation3 + $0x320] sm:$0xf]
        %v1276 = vld [vmem:[#allocation3 + $0x328] sm:$0xf]
        %v1277 = vld [vmem:[#allocation3 + $0x330] sm:$0xf]
        %v1278 = vld [vmem:[#allocation3 + $0x338] sm:$0xf]
        %v1279 = vld [vmem:[#allocation3 + $0x340] sm:$0xf]
        %v1280 = vld [vmem:[#allocation3 + $0x348] sm:$0xf]
        %v1281 = vld [vmem:[#allocation3 + $0x350] sm:$0xf]
        %v1282 = vld [vmem:[#allocation3 + $0x358] sm:$0xf]
        %v1291 = vunpack.c.l.b16 %v1275
        %v1292 = vunpack.c.l.b16 %v1276
        %v1293 = vunpack.c.l.b16 %v1277
        %v1294 = vunpack.c.l.b16 %v1278
        %v1295 = vunpack.c.l.b16 %v1279
        %v1296 = vunpack.c.l.b16 %v1280
        %v1297 = vunpack.c.l.b16 %v1281
        %v1298 = vunpack.c.l.b16 %v1282
        %v1299 = vpack.c.b16 %v1292, %v1291
        %v1300 = vpack.c.b16 %v1294, %v1293
        %v1301 = vpack.c.b16 %v1296, %v1295
        %v1302 = vpack.c.b16 %v1298, %v1297
        %1307 = vmatprep.subr.bf16.mxu0 0
        %1308 = vmatpush1.bf16.msra.mxu0 %v1299
        %1309 = vmatprep.subr.bf16.mxu0 0
        %1310 = vmatpush1.bf16.msra.mxu0 %v1300
        %1311 = vmatprep.subr.bf16.mxu0 0
        %1312 = vmatpush1.bf16.msra.mxu0 %v1301
        %1313 = vmatprep.subr.bf16.mxu0 0
        %1314 = vmatpush1.bf16.msra.mxu0 %v1302
        %1315 = vmatprep.subr.bf16.mxu0 0
        %1316 = vmatpush1.bf16.msra.mxu0 0
        %1317 = vmatprep.subr.bf16.mxu0 0
        %1318 = vmatpush1.bf16.msra.mxu0 0
        %1319 = vmatprep.subr.bf16.mxu0 0
        %1320 = vmatpush1.bf16.msra.mxu0 0
        %1321 = vmatprep.subr.bf16.mxu0 0
        %1322 = vmatpush1.bf16.msra.mxu0 0
        %1323 = vmatprep.subr.bf16.mxu0 0
        %1324 = vmatpush1.bf16.msra.mxu0 0
        %1325 = vmatprep.subr.bf16.mxu0 0
        %1326 = vmatpush1.bf16.msra.mxu0 0
        %1327 = vmatprep.subr.bf16.mxu0 0
        %1328 = vmatpush1.bf16.msra.mxu0 0
        %1329 = vmatprep.subr.bf16.mxu0 0
        %1330 = vmatpush1.bf16.msra.mxu0 0
        %1331 = vmatprep.subr.bf16.mxu0 0
        %1332 = vmatpush1.bf16.msra.mxu0 0
        %1333 = vmatprep.subr.bf16.mxu0 0
        %1334 = vmatpush1.bf16.msra.mxu0 0
        %1335 = vmatprep.subr.bf16.mxu0 0
        %1336 = vmatpush1.bf16.msra.mxu0 0
        %1337 = vmatprep.subr.bf16.mxu0 0
        %1338 = vmatpush1.bf16.msra.mxu0 0
        %1339 = vmatprep.mubr.bf16.mxu0 0
        %1340 = vmatmul.mubr.bf16.gmra.mrb[0].mxu0 %v732
        %v1341 = vpop.f32.mrb[0].mxu0
        %v1342 = vadd.f32 0.0, %v1341
        %v1343 = vpop.f32.mrb[0].mxu0
        %v1344 = vpop.f32.mrb[0].mxu0
        %v1345 = vadd.f32 0.0, %v1344
        %v1346 = vpop.f32.mrb[0].mxu0
        %1347 = vmatprep.mubr.bf16.mxu0 0
        %1348 = vmatmul.mubr.bf16.gmra.mrb[0].mxu0 %v735
        %v1349 = vpop.f32.mrb[0].mxu0
        %v1350 = vadd.f32 0.0, %v1349
        %v1351 = vpop.f32.mrb[0].mxu0
        %v1352 = vpop.f32.mrb[0].mxu0
        %v1353 = vpop.f32.mrb[0].mxu0
        %1354 = vdwg.mxu0
        %v1355 = vpack.c.bf16 %v1345, %v1342
        %v1356 = vpack.c.bf16 %v1350, %v1350
        %v1358 = vsel %vm405, %v1191, 0
        %v1361 = vsel %vm405, %v1192, 0
        %v1364 = vsel %vm405, %v1273, 0
        %v1367 = vsel %vm405, %v1274, 0
        %1369 = vmatprep.subr.bf16.mxu0 0
        %1370 = vmatpush1.bf16.xpose.msra.mxu0 %v1364
        %1371 = vmatprep.subr.bf16.mxu0 0
        %1372 = vmatpush1.bf16.xpose.msra.mxu0 %v1367
        %1373 = vmatprep.subr.bf16.mxu0 0
        %1374 = vmatpush1.bf16.xpose.msra.mxu0 0
        %1375 = vmatprep.subr.bf16.mxu0 0
        %1376 = vmatpush1.bf16.xpose.msra.mxu0 0
        %1377 = vmatprep.subr.bf16.mxu0 0
        %1378 = vmatpush1.bf16.xpose.msra.mxu0 0
        %1379 = vmatprep.subr.bf16.mxu0 0
        %1380 = vmatpush1.bf16.xpose.msra.mxu0 0
        %1381 = vmatprep.subr.bf16.mxu0 0
        %1382 = vmatpush1.bf16.xpose.msra.mxu0 0
        %1383 = vmatprep.subr.bf16.mxu0 0
        %1384 = vmatpush1.bf16.xpose.msra.mxu0 0
        %1385 = vmatprep.subr.bf16.mxu0 0
        %1386 = vmatpush1.bf16.xpose.msra.mxu0 0
        %1387 = vmatprep.subr.bf16.mxu0 0
        %1388 = vmatpush1.bf16.xpose.msra.mxu0 0
        %1389 = vmatprep.subr.bf16.mxu0 0
        %1390 = vmatpush1.bf16.xpose.msra.mxu0 0
        %1391 = vmatprep.subr.bf16.mxu0 0
        %1392 = vmatpush1.bf16.xpose.msra.mxu0 0
        %1393 = vmatprep.subr.bf16.mxu0 0
        %1394 = vmatpush1.bf16.xpose.msra.mxu0 0
        %1395 = vmatprep.subr.bf16.mxu0 0
        %1396 = vmatpush1.bf16.xpose.msra.mxu0 0
        %1397 = vmatprep.subr.bf16.mxu0 0
        %1398 = vmatpush1.bf16.xpose.msra.mxu0 0
        %1399 = vmatprep.subr.bf16.mxu0 0
        %1400 = vmatpush1.bf16.xpose.msra.mxu0 0
        %1401 = vmatprep.mubr.bf16.mxu0 0
        %1402 = vmatmul.mubr.bf16.gmra.mrb[0].mxu0 %v1358
        %v1403 = vpop.f32.mrb[0].mxu0
        %v1404 = vadd.f32 %v669, %v1403
        %v1405 = vpop.f32.mrb[0].mxu0
        %v1406 = vpop.f32.mrb[0].mxu0
        %v1407 = vadd.f32 %v670, %v1406
        %v1408 = vpop.f32.mrb[0].mxu0
        %1409 = vmatprep.mubr.bf16.mxu0 0
        %1410 = vmatmul.mubr.bf16.gmra.mrb[0].mxu0 %v1361
        %v1411 = vpop.f32.mrb[0].mxu0
        %v1412 = vadd.f32 %v671, %v1411
        %v1413 = vpop.f32.mrb[0].mxu0
        %v1414 = vpop.f32.mrb[0].mxu0
        %v1415 = vpop.f32.mrb[0].mxu0
        %1416 = vdwg.mxu0
        %v1417 = vsel %vm1011, %v1404, -inf
        %1418 = vmax.xlane.f32.xlu0 %v1417
        %v1419 = vpop.xlane.xlu0 %1418
        %v1420 = vsel %vm1011, %v1407, -inf
        %1421 = vmax.xlane.f32.xlu0 %v1420
        %v1422 = vpop.xlane.xlu0 %1421
        %v1423 = vsel %vm1011, %v1412, -inf
        %1424 = vmax.xlane.f32.xlu0 %v1423
        %v1425 = vpop.xlane.xlu0 %1424
        %v1426 = vsub.f32 %v1404, %v1419
        %v1427 = vsub.f32 %v1407, %v1422
        %v1428 = vsub.f32 %v1412, %v1425
        %v1429 = vmul.f32 %v1426, 1.442695
        %v1430 = vpow.pop %v1429
        %v1431 = vmul.f32 %v1427, 1.442695
        %v1432 = vpow.pop %v1431
        %v1433 = vmul.f32 %v1428, 1.442695
        %v1434 = vpow.pop %v1433
        %v1435 = vsel %vm1011, %v1430, 0.0
        %1436 = vadd.xlane.f32.xlu0 %v1435
        %v1437 = vpop.xlane.xlu0 %1436
        %v1438 = vsel %vm1011, %v1432, 0.0
        %1439 = vadd.xlane.f32.xlu0 %v1438
        %v1440 = vpop.xlane.xlu0 %1439
        %v1441 = vsel %vm1011, %v1434, 0.0
        %1442 = vadd.xlane.f32.xlu0 %v1441
        %v1443 = vpop.xlane.xlu0 %1442
        %v1444 = vrcp.pop %v1437
        %v1445 = vmul.f32 %v1430, %v1444
        %v1446 = vrcp.pop %v1440
        %v1447 = vmul.f32 %v1432, %v1446
        %v1448 = vrcp.pop %v1443
        %v1449 = vmul.f32 %v1434, %v1448
        %v1450 = vpack.c.bf16 %v1447, %v1445
        %v1451 = vpack.c.bf16 %v1449, %v1449
        %v1453 = vsel %vm1011, %v1450, 0
        %v1456 = vsel %vm1011, %v1451, 0
        %v1459 = vsel %vm1053, %v1356, 0
        %1461 = vmatprep.subr.bf16.mxu0 0
        %1462 = vmatpush1.bf16.msra.mxu0 %v1355
        %1463 = vmatprep.subr.bf16.mxu0 0
        %1464 = vmatpush1.bf16.msra.mxu0 %v1459
        %1465 = vmatprep.subr.bf16.mxu0 0
        %1466 = vmatpush1.bf16.msra.mxu0 0
        %1467 = vmatprep.subr.bf16.mxu0 0
        %1468 = vmatpush1.bf16.msra.mxu0 0
        %1469 = vmatprep.subr.bf16.mxu0 0
        %1470 = vmatpush1.bf16.msra.mxu0 0
        %1471 = vmatprep.subr.bf16.mxu0 0
        %1472 = vmatpush1.bf16.msra.mxu0 0
        %1473 = vmatprep.subr.bf16.mxu0 0
        %1474 = vmatpush1.bf16.msra.mxu0 0
        %1475 = vmatprep.subr.bf16.mxu0 0
        %1476 = vmatpush1.bf16.msra.mxu0 0
        %1477 = vmatprep.subr.bf16.mxu0 0
        %1478 = vmatpush1.bf16.msra.mxu0 0
        %1479 = vmatprep.subr.bf16.mxu0 0
        %1480 = vmatpush1.bf16.msra.mxu0 0
        %1481 = vmatprep.subr.bf16.mxu0 0
        %1482 = vmatpush1.bf16.msra.mxu0 0
        %1483 = vmatprep.subr.bf16.mxu0 0
        %1484 = vmatpush1.bf16.msra.mxu0 0
        %1485 = vmatprep.subr.bf16.mxu0 0
        %1486 = vmatpush1.bf16.msra.mxu0 0
        %1487 = vmatprep.subr.bf16.mxu0 0
        %1488 = vmatpush1.bf16.msra.mxu0 0
        %1489 = vmatprep.subr.bf16.mxu0 0
        %1490 = vmatpush1.bf16.msra.mxu0 0
        %1491 = vmatprep.subr.bf16.mxu0 0
        %1492 = vmatpush1.bf16.msra.mxu0 0
        %1493 = vmatprep.mubr.bf16.mxu0 0
        %1494 = vmatmul.mubr.bf16.gmra.mrb[0].mxu0 %v1453
        %v1495 = vpop.f32.mrb[0].mxu0
        %v1496 = vadd.f32 0.0, %v1495
        %v1497 = vpop.f32.mrb[0].mxu0
        %v1498 = vpop.f32.mrb[0].mxu0
        %v1499 = vadd.f32 0.0, %v1498
        %v1500 = vpop.f32.mrb[0].mxu0
        %1501 = vmatprep.mubr.bf16.mxu0 0
        %1502 = vmatmul.mubr.bf16.gmra.mrb[0].mxu0 %v1456
        %v1503 = vpop.f32.mrb[0].mxu0
        %v1504 = vadd.f32 0.0, %v1503
        %v1505 = vpop.f32.mrb[0].mxu0
        %v1506 = vpop.f32.mrb[0].mxu0
        %v1507 = vpop.f32.mrb[0].mxu0
        %1508 = vdwg.mxu0
        %v1509 = vpack.c.bf16 %v1499, %v1496
        %v1510 = vpack.c.bf16 %v1504, %v1504
        %v1511 = vld [vmem:[#allocation3 + $0x380] sm:$0xf]
        %v1512 = vld [vmem:[#allocation3 + $0x388] sm:$0xf]
        %v1513 = vld [vmem:[#allocation3 + $0x390] sm:$0xf]
        %v1514 = vld [vmem:[#allocation3 + $0x398] sm:$0xf]
        %v1519 = vunpack.c.l.b16 %v1511
        %v1520 = vunpack.c.l.b16 %v1512
        %v1521 = vunpack.c.l.b16 %v1513
        %v1522 = vunpack.c.l.b16 %v1514
        %v1523 = vpack.c.b16 %v1520, %v1519
        %v1524 = vpack.c.b16 %v1522, %v1521
        %v1528 = vsel %vm405, %v1509, 0
        %v1531 = vsel %vm405, %v1510, 0
        %1533 = vmatprep.subr.bf16.mxu0 0
        %1534 = vmatpush1.bf16.msra.mxu0 %v1523
        %1535 = vmatprep.subr.bf16.mxu0 0
        %1536 = vmatpush1.bf16.msra.mxu0 %v1524
        %1537 = vmatprep.subr.bf16.mxu0 0
        %1538 = vmatpush1.bf16.msra.mxu0 0
        %1539 = vmatprep.subr.bf16.mxu0 0
        %1540 = vmatpush1.bf16.msra.mxu0 0
        %1541 = vmatprep.subr.bf16.mxu0 0
        %1542 = vmatpush1.bf16.msra.mxu0 0
        %1543 = vmatprep.subr.bf16.mxu0 0
        %1544 = vmatpush1.bf16.msra.mxu0 0
        %1545 = vmatprep.subr.bf16.mxu0 0
        %1546 = vmatpush1.bf16.msra.mxu0 0
        %1547 = vmatprep.subr.bf16.mxu0 0
        %1548 = vmatpush1.bf16.msra.mxu0 0
        %1549 = vmatprep.subr.bf16.mxu0 0
        %1550 = vmatpush1.bf16.msra.mxu0 0
        %1551 = vmatprep.subr.bf16.mxu0 0
        %1552 = vmatpush1.bf16.msra.mxu0 0
        %1553 = vmatprep.subr.bf16.mxu0 0
        %1554 = vmatpush1.bf16.msra.mxu0 0
        %1555 = vmatprep.subr.bf16.mxu0 0
        %1556 = vmatpush1.bf16.msra.mxu0 0
        %1557 = vmatprep.subr.bf16.mxu0 0
        %1558 = vmatpush1.bf16.msra.mxu0 0
        %1559 = vmatprep.subr.bf16.mxu0 0
        %1560 = vmatpush1.bf16.msra.mxu0 0
        %1561 = vmatprep.subr.bf16.mxu0 0
        %1562 = vmatpush1.bf16.msra.mxu0 0
        %1563 = vmatprep.subr.bf16.mxu0 0
        %1564 = vmatpush1.bf16.msra.mxu0 0
        %1565 = vmatprep.mubr.bf16.mxu0 0
        %1566 = vmatmul.mubr.bf16.gmra.mrb[0].mxu0 %v1528
        %v1567 = vpop.f32.mrb[0].mxu0
        %v1568 = vadd.f32 0.0, %v1567
        %v1569 = vpop.f32.mrb[0].mxu0
        %v1570 = vpop.f32.mrb[0].mxu0
        %v1571 = vadd.f32 0.0, %v1570
        %v1572 = vpop.f32.mrb[0].mxu0
        %1573 = vmatprep.mubr.bf16.mxu0 0
        %1574 = vmatmul.mubr.bf16.gmra.mrb[0].mxu0 %v1531
        %v1575 = vpop.f32.mrb[0].mxu0
        %v1576 = vadd.f32 0.0, %v1575
        %v1577 = vpop.f32.mrb[0].mxu0
        %v1578 = vpop.f32.mrb[0].mxu0
        %v1579 = vpop.f32.mrb[0].mxu0
        %1580 = vdwg.mxu0
        %v1585 = vunpack.c.l.b16 %v1107
        %v1586 = vunpack.c.l.b16 %v1108
        %v1587 = vunpack.c.l.b16 %v1109
        %v1588 = vunpack.c.l.b16 %v1110
        %v1589 = vpack.c.b16 %v1586, %v1585
        %v1590 = vpack.c.b16 %v1588, %v1587
        %v1594 = vsel %vm405, %v1105, 0
        %v1597 = vsel %vm405, %v1106, 0
        %1599 = vmatprep.subr.bf16.mxu0 0
        %1600 = vmatpush1.bf16.msra.mxu0 %v1589
        %1601 = vmatprep.subr.bf16.mxu0 0
        %1602 = vmatpush1.bf16.msra.mxu0 %v1590
        %1603 = vmatprep.subr.bf16.mxu0 0
        %1604 = vmatpush1.bf16.msra.mxu0 0
        %1605 = vmatprep.subr.bf16.mxu0 0
        %1606 = vmatpush1.bf16.msra.mxu0 0
        %1607 = vmatprep.subr.bf16.mxu0 0
        %1608 = vmatpush1.bf16.msra.mxu0 0
        %1609 = vmatprep.subr.bf16.mxu0 0
        %1610 = vmatpush1.bf16.msra.mxu0 0
        %1611 = vmatprep.subr.bf16.mxu0 0
        %1612 = vmatpush1.bf16.msra.mxu0 0
        %1613 = vmatprep.subr.bf16.mxu0 0
        %1614 = vmatpush1.bf16.msra.mxu0 0
        %1615 = vmatprep.subr.bf16.mxu0 0
        %1616 = vmatpush1.bf16.msra.mxu0 0
        %1617 = vmatprep.subr.bf16.mxu0 0
        %1618 = vmatpush1.bf16.msra.mxu0 0
        %1619 = vmatprep.subr.bf16.mxu0 0
        %1620 = vmatpush1.bf16.msra.mxu0 0
        %1621 = vmatprep.subr.bf16.mxu0 0
        %1622 = vmatpush1.bf16.msra.mxu0 0
        %1623 = vmatprep.subr.bf16.mxu0 0
        %1624 = vmatpush1.bf16.msra.mxu0 0
        %1625 = vmatprep.subr.bf16.mxu0 0
        %1626 = vmatpush1.bf16.msra.mxu0 0
        %1627 = vmatprep.subr.bf16.mxu0 0
        %1628 = vmatpush1.bf16.msra.mxu0 0
        %1629 = vmatprep.subr.bf16.mxu0 0
        %1630 = vmatpush1.bf16.msra.mxu0 0
        %1631 = vmatprep.mubr.bf16.mxu0 0
        %1632 = vmatmul.mubr.bf16.gmra.mrb[0].mxu0 %v1594
        %v1633 = vpop.f32.mrb[0].mxu0
        %v1634 = vadd.f32 %v1568, %v1633
        %v1635 = vpop.f32.mrb[0].mxu0
        %v1636 = vpop.f32.mrb[0].mxu0
        %v1637 = vadd.f32 %v1571, %v1636
        %v1638 = vpop.f32.mrb[0].mxu0
        %1639 = vmatprep.mubr.bf16.mxu0 0
        %1640 = vmatmul.mubr.bf16.gmra.mrb[0].mxu0 %v1597
        %v1641 = vpop.f32.mrb[0].mxu0
        %v1642 = vadd.f32 %v1576, %v1641
        %v1643 = vpop.f32.mrb[0].mxu0
        %v1644 = vpop.f32.mrb[0].mxu0
        %v1645 = vpop.f32.mrb[0].mxu0
        %1646 = vdwg.mxu0
        %v1647 = vadd.f32 %v651, %v1634
        %v1648 = vadd.f32 %v652, %v1637
        %v1649 = vadd.f32 %v653, %v1642
        %v1650 = vmul.f32 %v1647, %v1647
        %v1651 = vmul.f32 %v1648, %v1648
        %v1652 = vmul.f32 %v1649, %v1649
        %v1653 = vsel %vm339, %v1650, 0.0
        %1654 = vadd.xlane.f32.xlu0 %v1653
        %v1655 = vpop.xlane.xlu0 %1654
        %v1656 = vsel %vm339, %v1651, 0.0
        %1657 = vadd.xlane.f32.xlu0 %v1656
        %v1658 = vpop.xlane.xlu0 %1657
        %v1659 = vsel %vm339, %v1652, 0.0
        %1660 = vadd.xlane.f32.xlu0 %v1659
        %v1661 = vpop.xlane.xlu0 %1660
        %v1662 = vmul.f32 %v1655, %v684
        %v1663 = vmul.f32 %v1658, %v684
        %v1664 = vmul.f32 %v1661, %v684
        %v1665 = vadd.f32 %v1662, 1e-06
        %v1666 = vadd.f32 %v1663, 1e-06
        %v1667 = vadd.f32 %v1664, 1e-06
        %v1668 = vrsqrt.pop %v1665
        %v1669 = vrsqrt.pop %v1666
        %v1670 = vrsqrt.pop %v1667
        %v1671 = vmul.f32 %v1647, %v1668
        %v1672 = vmul.f32 %v1648, %v1669
        %v1673 = vmul.f32 %v1649, %v1670
        %v1674 = vpack.c.bf16 %v1672, %v1671
        %v1675 = vpack.c.bf16 %v1673, %v1673
        %v1676 = vld [vmem:[#allocation3 + $0x3a0] sm:$0xff]
        %v1677 = vld [vmem:[#allocation3 + $0x3a8] sm:$0xff]
        %v1678 = vld [vmem:[#allocation3 + $0x3b0] sm:$0xff]
        %v1679 = vld [vmem:[#allocation3 + $0x3b8] sm:$0xff]
        %v1680 = vld [vmem:[#allocation3 + $0x3c0] sm:$0xff]
        %v1681 = vld [vmem:[#allocation3 + $0x3c8] sm:$0xff]
        %v1682 = vld [vmem:[#allocation3 + $0x3d0] sm:$0xff]
        %v1683 = vld [vmem:[#allocation3 + $0x3d8] sm:$0xff]
        %v1692 = vunpack.c.l.b16 %v1676
        %v1693 = vunpack.c.h.b16 %v1676
        %v1694 = vunpack.c.l.b16 %v1677
        %v1695 = vunpack.c.h.b16 %v1677
        %v1696 = vunpack.c.l.b16 %v1678
        %v1697 = vunpack.c.h.b16 %v1678
        %v1698 = vunpack.c.l.b16 %v1679
        %v1699 = vunpack.c.h.b16 %v1679
        %v1700 = vunpack.c.l.b16 %v1680
        %v1701 = vunpack.c.h.b16 %v1680
        %v1702 = vunpack.c.l.b16 %v1681
        %v1703 = vunpack.c.h.b16 %v1681
        %v1704 = vunpack.c.l.b16 %v1682
        %v1705 = vunpack.c.h.b16 %v1682
        %v1706 = vunpack.c.l.b16 %v1683
        %v1707 = vunpack.c.h.b16 %v1683
        %v1708 = vpack.c.b16 %v1694, %v1692
        %v1709 = vpack.c.b16 %v1695, %v1693
        %v1710 = vpack.c.b16 %v1698, %v1696
        %v1711 = vpack.c.b16 %v1699, %v1697
        %v1712 = vpack.c.b16 %v1702, %v1700
        %v1713 = vpack.c.b16 %v1703, %v1701
        %v1714 = vpack.c.b16 %v1706, %v1704
        %v1715 = vpack.c.b16 %v1707, %v1705
        %v1725 = vsel %vm339, %v1674, 0
        %v1728 = vsel %vm339, %v1675, 0
        %1730 = vmatprep.subr.bf16.mxu0 %v1709
        %1731 = vmatpush1.bf16.msra.mxu0 %v1708
        %1732 = vmatprep.subr.bf16.mxu0 %v1711
        %1733 = vmatpush1.bf16.msra.mxu0 %v1710
        %1734 = vmatprep.subr.bf16.mxu0 %v1713
        %1735 = vmatpush1.bf16.msra.mxu0 %v1712
        %1736 = vmatprep.subr.bf16.mxu0 %v1715
        %1737 = vmatpush1.bf16.msra.mxu0 %v1714
        %1738 = vmatprep.subr.bf16.mxu0 0
        %1739 = vmatpush1.bf16.msra.mxu0 0
        %1740 = vmatprep.subr.bf16.mxu0 0
        %1741 = vmatpush1.bf16.msra.mxu0 0
        %1742 = vmatprep.subr.bf16.mxu0 0
        %1743 = vmatpush1.bf16.msra.mxu0 0
        %1744 = vmatprep.subr.bf16.mxu0 0
        %1745 = vmatpush1.bf16.msra.mxu0 0
        %1746 = vmatprep.subr.bf16.mxu0 0
        %1747 = vmatpush1.bf16.msra.mxu0 0
        %1748 = vmatprep.subr.bf16.mxu0 0
        %1749 = vmatpush1.bf16.msra.mxu0 0
        %1750 = vmatprep.subr.bf16.mxu0 0
        %1751 = vmatpush1.bf16.msra.mxu0 0
        %1752 = vmatprep.subr.bf16.mxu0 0
        %1753 = vmatpush1.bf16.msra.mxu0 0
        %1754 = vmatprep.subr.bf16.mxu0 0
        %1755 = vmatpush1.bf16.msra.mxu0 0
        %1756 = vmatprep.subr.bf16.mxu0 0
        %1757 = vmatpush1.bf16.msra.mxu0 0
        %1758 = vmatprep.subr.bf16.mxu0 0
        %1759 = vmatpush1.bf16.msra.mxu0 0
        %1760 = vmatprep.subr.bf16.mxu0 0
        %1761 = vmatpush1.bf16.msra.mxu0 0
        %1762 = vmatprep.mubr.bf16.mxu0 0
        %1763 = vmatmul.mubr.bf16.gmra.mrb[0].mxu0 %v1725
        %v1764 = vpop.f32.mrb[0].mxu0
        %v1765 = vadd.f32 0.0, %v1764
        %v1766 = vpop.f32.mrb[0].mxu0
        %v1767 = vadd.f32 0.0, %v1766
        %v1768 = vpop.f32.mrb[0].mxu0
        %v1769 = vadd.f32 0.0, %v1768
        %v1770 = vpop.f32.mrb[0].mxu0
        %v1771 = vadd.f32 0.0, %v1770
        %1772 = vmatprep.mubr.bf16.mxu0 0
        %1773 = vmatmul.mubr.bf16.gmra.mrb[0].mxu0 %v1728
        %v1774 = vpop.f32.mrb[0].mxu0
        %v1775 = vadd.f32 0.0, %v1774
        %v1776 = vpop.f32.mrb[0].mxu0
        %v1777 = vadd.f32 0.0, %v1776
        %v1778 = vpop.f32.mrb[0].mxu0
        %v1779 = vpop.f32.mrb[0].mxu0
        %1780 = vdwg.mxu0
        %v1781 = vxor.u32 %v1765, 2147483648
        %v1782 = vxor.u32 %v1769, 2147483648
        %v1783 = vxor.u32 %v1775, 2147483648
        %v1784 = vmul.f32 %v1781, 1.442695
        %v1785 = vpow.pop %v1784
        %v1786 = vmul.f32 %v1782, 1.442695
        %v1787 = vpow.pop %v1786
        %v1788 = vmul.f32 %v1783, 1.442695
        %v1789 = vpow.pop %v1788
        %v1790 = vadd.f32 %v1785, 1.0
        %v1791 = vadd.f32 %v1787, 1.0
        %v1792 = vadd.f32 %v1789, 1.0
        %v1793 = vrcp.pop %v1790
        %v1794 = vmul.f32 1.0, %v1793
        %v1795 = vrcp.pop %v1791
        %v1796 = vmul.f32 1.0, %v1795
        %v1797 = vrcp.pop %v1792
        %v1798 = vmul.f32 1.0, %v1797
        %v1799 = vmul.f32 %v1765, %v1794
        %v1800 = vmul.f32 %v1769, %v1796
        %v1801 = vmul.f32 %v1775, %v1798
        %v1802 = vmul.f32 %v1799, %v1767
        %v1803 = vmul.f32 %v1800, %v1771
        %v1804 = vmul.f32 %v1801, %v1777
        %v1805 = vpack.c.bf16 %v1803, %v1802
        %v1806 = vpack.c.bf16 %v1804, %v1804
        %v1807 = vld [vmem:[#allocation3 + $0x3e0] sm:$0xf]
        %v1808 = vld [vmem:[#allocation3 + $0x3e8] sm:$0xf]
        %v1809 = vld [vmem:[#allocation3 + $0x3f0] sm:$0xf]
        %v1810 = vld [vmem:[#allocation3 + $0x3f8] sm:$0xf]
        %v1811 = vld [vmem:[#allocation3 + $0x400] sm:$0xf]
        %v1812 = vld [vmem:[#allocation3 + $0x408] sm:$0xf]
        %v1813 = vld [vmem:[#allocation3 + $0x410] sm:$0xf]
        %v1814 = vld [vmem:[#allocation3 + $0x418] sm:$0xf]
        %v1815 = vld [vmem:[#allocation3 + $0x420] sm:$0xf]
        %v1816 = vld [vmem:[#allocation3 + $0x428] sm:$0xf]
        %v1817 = vld [vmem:[#allocation3 + $0x430] sm:$0xf]
        %v1818 = vld [vmem:[#allocation3 + $0x438] sm:$0xf]
        %v1819 = vld [vmem:[#allocation3 + $0x440] sm:$0xf]
        %v1820 = vld [vmem:[#allocation3 + $0x448] sm:$0xf]
        %v1821 = vld [vmem:[#allocation3 + $0x450] sm:$0xf]
        %v1822 = vld [vmem:[#allocation3 + $0x458] sm:$0xf]
        %v1839 = vunpack.c.l.b16 %v1807
        %v1840 = vunpack.c.l.b16 %v1808
        %v1841 = vunpack.c.l.b16 %v1809
        %v1842 = vunpack.c.l.b16 %v1810
        %v1843 = vunpack.c.l.b16 %v1811
        %v1844 = vunpack.c.l.b16 %v1812
        %v1845 = vunpack.c.l.b16 %v1813
        %v1846 = vunpack.c.l.b16 %v1814
        %v1847 = vunpack.c.l.b16 %v1815
        %v1848 = vunpack.c.l.b16 %v1816
        %v1849 = vunpack.c.l.b16 %v1817
        %v1850 = vunpack.c.l.b16 %v1818
        %v1851 = vunpack.c.l.b16 %v1819
        %v1852 = vunpack.c.l.b16 %v1820
        %v1853 = vunpack.c.l.b16 %v1821
        %v1854 = vunpack.c.l.b16 %v1822
        %v1855 = vpack.c.b16 %v1840, %v1839
        %v1856 = vpack.c.b16 %v1842, %v1841
        %v1857 = vpack.c.b16 %v1844, %v1843
        %v1858 = vpack.c.b16 %v1846, %v1845
        %v1859 = vpack.c.b16 %v1848, %v1847
        %v1860 = vpack.c.b16 %v1850, %v1849
        %v1861 = vpack.c.b16 %v1852, %v1851
        %v1862 = vpack.c.b16 %v1854, %v1853
        %1871 = vmatprep.subr.bf16.mxu0 0
        %1872 = vmatpush1.bf16.msra.mxu0 %v1855
        %1873 = vmatprep.subr.bf16.mxu0 0
        %1874 = vmatpush1.bf16.msra.mxu0 %v1856
        %1875 = vmatprep.subr.bf16.mxu0 0
        %1876 = vmatpush1.bf16.msra.mxu0 %v1857
        %1877 = vmatprep.subr.bf16.mxu0 0
        %1878 = vmatpush1.bf16.msra.mxu0 %v1858
        %1879 = vmatprep.subr.bf16.mxu0 0
        %1880 = vmatpush1.bf16.msra.mxu0 %v1859
        %1881 = vmatprep.subr.bf16.mxu0 0
        %1882 = vmatpush1.bf16.msra.mxu0 %v1860
        %1883 = vmatprep.subr.bf16.mxu0 0
        %1884 = vmatpush1.bf16.msra.mxu0 %v1861
        %1885 = vmatprep.subr.bf16.mxu0 0
        %1886 = vmatpush1.bf16.msra.mxu0 %v1862
        %1887 = vmatprep.subr.bf16.mxu0 0
        %1888 = vmatpush1.bf16.msra.mxu0 0
        %1889 = vmatprep.subr.bf16.mxu0 0
        %1890 = vmatpush1.bf16.msra.mxu0 0
        %1891 = vmatprep.subr.bf16.mxu0 0
        %1892 = vmatpush1.bf16.msra.mxu0 0
        %1893 = vmatprep.subr.bf16.mxu0 0
        %1894 = vmatpush1.bf16.msra.mxu0 0
        %1895 = vmatprep.subr.bf16.mxu0 0
        %1896 = vmatpush1.bf16.msra.mxu0 0
        %1897 = vmatprep.subr.bf16.mxu0 0
        %1898 = vmatpush1.bf16.msra.mxu0 0
        %1899 = vmatprep.subr.bf16.mxu0 0
        %1900 = vmatpush1.bf16.msra.mxu0 0
        %1901 = vmatprep.subr.bf16.mxu0 0
        %1902 = vmatpush1.bf16.msra.mxu0 0
        %1903 = vmatprep.mubr.bf16.mxu0 0
        %1904 = vmatmul.mubr.bf16.gmra.mrb[0].mxu0 %v1805
        %v1905 = vpop.f32.mrb[0].mxu0
        %v1906 = vpop.f32.mrb[0].mxu0
        %v1907 = vpop.f32.mrb[0].mxu0
        %v1908 = vadd.f32 0.0, %v1907
        %v1909 = vpop.f32.mrb[0].mxu0
        %1910 = vmatprep.mubr.bf16.mxu0 0
        %1911 = vmatmul.mubr.bf16.gmra.mrb[0].mxu0 %v1806
        %v1912 = vpop.f32.mrb[0].mxu0
        %v1913 = vadd.f32 0.0, %v1912
        %v1914 = vpop.f32.mrb[0].mxu0
        %v1915 = vpop.f32.mrb[0].mxu0
        %v1916 = vpop.f32.mrb[0].mxu0
        %1917 = vdwg.mxu0
        %v1918 = vadd.f32 %v1648, %v1908
        %v1919 = vadd.f32 %v1649, %v1913
        %v1920 = vmul.f32 %v1918, %v1918
        %v1921 = vmul.f32 %v1919, %v1919
        %v1922 = vsel %vm339, %v1920, 0.0
        %1923 = vadd.xlane.f32.xlu0 %v1922
        %v1924 = vpop.xlane.xlu0 %1923
        %vm1925 = vcmask 520192
        %v1926 = vsel %vm1925, %v1921, 0.0
        %1927 = vadd.xlane.f32.xlu0 %v1926
        %v1928 = vpop.xlane.xlu0 %1927
        %v1929 = vmul.f32 %v1924, %v684
        %v1930 = vmul.f32 %v1928, %v684
        %v1931 = vadd.f32 %v1929, 1e-06
        %v1932 = vadd.f32 %v1930, 1e-06
        %v1933 = vrsqrt.pop %v1931
        %v1934 = vrsqrt.pop %v1932
        %v1935 = vmul.f32 %v1918, %v1933
        %v1936 = vmul.f32 %v1919, %v1934
        %v1937 = vpack.c.bf16 %v1936, %v1935
        %v1938 = vld [vmem:[#allocation3 + $0x460] sm:$0xff]
        %v1939 = vld [vmem:[#allocation3 + $0x468] sm:$0xff]
        %v1940 = vld [vmem:[#allocation3 + $0x470] sm:$0xff]
        %v1941 = vld [vmem:[#allocation3 + $0x478] sm:$0xff]
        %v1942 = vld [vmem:[#allocation3 + $0x480] sm:$0xff]
        %v1943 = vld [vmem:[#allocation3 + $0x488] sm:$0xff]
        %v1944 = vld [vmem:[#allocation3 + $0x490] sm:$0xff]
        %v1945 = vld [vmem:[#allocation3 + $0x498] sm:$0xff]
        %v1954 = vunpack.c.l.b16 %v1938
        %v1955 = vunpack.c.h.b16 %v1938
        %v1956 = vunpack.c.l.b16 %v1939
        %v1957 = vunpack.c.h.b16 %v1939
        %v1958 = vunpack.c.l.b16 %v1940
        %v1959 = vunpack.c.h.b16 %v1940
        %v1960 = vunpack.c.l.b16 %v1941
        %v1961 = vunpack.c.h.b16 %v1941
        %v1962 = vunpack.c.l.b16 %v1942
        %v1963 = vunpack.c.h.b16 %v1942
        %v1964 = vunpack.c.l.b16 %v1943
        %v1965 = vunpack.c.h.b16 %v1943
        %v1966 = vunpack.c.l.b16 %v1944
        %v1967 = vunpack.c.h.b16 %v1944
        %v1968 = vunpack.c.l.b16 %v1945
        %v1969 = vunpack.c.h.b16 %v1945
        %v1970 = vpack.c.b16 %v1956, %v1954
        %v1971 = vpack.c.b16 %v1957, %v1955
        %v1972 = vpack.c.b16 %v1960, %v1958
        %v1973 = vpack.c.b16 %v1961, %v1959
        %v1974 = vpack.c.b16 %v1964, %v1962
        %v1975 = vpack.c.b16 %v1965, %v1963
        %v1976 = vpack.c.b16 %v1968, %v1966
        %v1977 = vpack.c.b16 %v1969, %v1967
        %v1987 = vsel %vm339, %v1937, 0
        %1989 = vmatprep.subr.bf16.mxu0 %v1971
        %1990 = vmatpush1.bf16.msra.mxu0 %v1970
        %1991 = vmatprep.subr.bf16.mxu0 %v1973
        %1992 = vmatpush1.bf16.msra.mxu0 %v1972
        %1993 = vmatprep.subr.bf16.mxu0 %v1975
        %1994 = vmatpush1.bf16.msra.mxu0 %v1974
        %1995 = vmatprep.subr.bf16.mxu0 %v1977
        %1996 = vmatpush1.bf16.msra.mxu0 %v1976
        %1997 = vmatprep.subr.bf16.mxu0 0
        %1998 = vmatpush1.bf16.msra.mxu0 0
        %1999 = vmatprep.subr.bf16.mxu0 0
        %2000 = vmatpush1.bf16.msra.mxu0 0
        %2001 = vmatprep.subr.bf16.mxu0 0
        %2002 = vmatpush1.bf16.msra.mxu0 0
        %2003 = vmatprep.subr.bf16.mxu0 0
        %2004 = vmatpush1.bf16.msra.mxu0 0
        %2005 = vmatprep.subr.bf16.mxu0 0
        %2006 = vmatpush1.bf16.msra.mxu0 0
        %2007 = vmatprep.subr.bf16.mxu0 0
        %2008 = vmatpush1.bf16.msra.mxu0 0
        %2009 = vmatprep.subr.bf16.mxu0 0
        %2010 = vmatpush1.bf16.msra.mxu0 0
        %2011 = vmatprep.subr.bf16.mxu0 0
        %2012 = vmatpush1.bf16.msra.mxu0 0
        %2013 = vmatprep.subr.bf16.mxu0 0
        %2014 = vmatpush1.bf16.msra.mxu0 0
        %2015 = vmatprep.subr.bf16.mxu0 0
        %2016 = vmatpush1.bf16.msra.mxu0 0
        %2017 = vmatprep.subr.bf16.mxu0 0
        %2018 = vmatpush1.bf16.msra.mxu0 0
        %2019 = vmatprep.subr.bf16.mxu0 0
        %2020 = vmatpush1.bf16.msra.mxu0 0
        %2021 = vmatprep.mubr.bf16.mxu0 0
        %2022 = vmatmul.mubr.bf16.gmra.mrb[0].mxu0 %v1987
        %v2023 = vpop.f32.mrb[0].mxu0
        %v2024 = vadd.f32 0.0, %v2023
        %v2025 = vpop.f32.mrb[0].mxu0
        %v2026 = vadd.f32 0.0, %v2025
        %v2027 = vpop.f32.mrb[0].mxu0
        %v2028 = vadd.f32 0.0, %v2027
        %v2029 = vpop.f32.mrb[0].mxu0
        %v2030 = vadd.f32 0.0, %v2029
        %2031 = vdwg.mxu0
        %vm2032 = vcmp.eq.s32.totalorder %v449, 0
        %vm2033 = vcmp.eq.s32.totalorder %v450, 0
        %v2034 = vsel %vm2032, 4294967196, %v449
        %v2035 = vsel %vm2033, 4294967196, %v450
        %v2036 = vmax.f32 %v2024, %v2026
        %2037 = vmax.xlane.f32.xlu0 %v2036
        %v2038 = vpop.xlane.xlu0 %2037
        %vm2039 = vcmask 1044480
        %v2040 = vsel %vm2039, %v2028, -inf
        %v2041 = vsel %vm2039, %v2030, -inf
        %v2042 = vmax.f32 %v2040, %v2041
        %2043 = vmax.xlane.f32.xlu0 %v2042
        %v2044 = vpop.xlane.xlu0 %2043
        %v2045 = vsub.f32 %v2024, %v2038
        %v2046 = vsub.f32 %v2026, %v2038
        %v2047 = vsub.f32 %v2028, %v2044
        %v2048 = vsub.f32 %v2030, %v2044
        %v2049 = vmul.f32 %v2045, 1.442695
        %v2050 = vpow.pop %v2049
        %v2051 = vmul.f32 %v2046, 1.442695
        %v2052 = vpow.pop %v2051
        %v2053 = vmul.f32 %v2047, 1.442695
        %v2054 = vpow.pop %v2053
        %v2055 = vmul.f32 %v2048, 1.442695
        %v2056 = vpow.pop %v2055
        %v2057 = vadd.f32 %v2050, %v2052
        %2058 = vadd.xlane.f32.xlu0 %v2057
        %v2059 = vpop.xlane.xlu0 %2058
        %v2060 = vsel %vm2039, %v2054, 0.0
        %v2061 = vsel %vm2039, %v2056, 0.0
        %v2062 = vadd.f32 %v2060, %v2061
        %2063 = vadd.xlane.f32.xlu0 %v2062
        %v2064 = vpop.xlane.xlu0 %2063
        %v2065 = vlog2.pop %v2059
        %v2066 = vmul.f32 %v2065, 0.6931472
        %v2067 = vlog2.pop %v2064
        %v2068 = vmul.f32 %v2067, 0.6931472
        %v2069 = vadd.f32 %v2038, %v2066
        %v2070 = vadd.f32 %v2044, %v2068
        %2071 = vset.pattern.permute.xlu0 0
        %2072 = vperm.xlu0 %2071, %v2034
        %v2073 = vpop.permute.xlu0 %2072
        %2074 = vset.pattern.permute.xlu0 0
        %2075 = vperm.xlu0 %2074, %v2035
        %v2076 = vpop.permute.xlu0 %2075
        %vm2077 = vcmp.eq.s32.totalorder %v452, %v2073
        %vm2078 = vcmp.eq.s32.totalorder %v453, %v2073
        %vm2079 = vcmp.eq.s32.totalorder %v452, %v2076
        %vm2080 = vcmp.eq.s32.totalorder %v453, %v2076
        %vm2085 = vcmask 1040384
        %v2086 = vrot.slane %v2024, 7
        %v2087 = vrot.slane %v2026, 7
        %v2088 = vrot.slane %v2028, 7
        %v2089 = vsel %vm2085, %v2086, %v2088
        %v2090 = vrot.slane %v2030, 7
        %v2091 = vsel %vm2085, %v2087, %v2090
        %v2096 = vsel %vm2077, %v2086, 0.0
        %v2097 = vsel %vm2078, %v2087, 0.0
        %v2098 = vsel %vm2079, %v2089, 0.0
        %v2099 = vsel %vm2080, %v2091, 0.0
        %vm2100 = vcmask 1047553
        %v2101 = vsel %vm2100, %v2096, 0.0
        %v2102 = vsel %vm2100, %v2097, 0.0
        %v2103 = vadd.f32 %v2101, %v2102
        %2104 = vadd.xlane.f32.xlu0 %v2103
        %v2105 = vpop.xlane.xlu0 %2104
        %vm2106 = vcmask 1045504
        %v2107 = vsel %vm2106, %v2098, 0.0
        %v2108 = vsel %vm2106, %v2099, 0.0
        %v2109 = vadd.f32 %v2107, %v2108
        %2110 = vadd.xlane.f32.xlu0 %v2109
        %v2111 = vpop.xlane.xlu0 %2110
        %vm2112 = vcmp.ne.s32.totalorder %v2034, 4294967196
        %vm2113 = vcmp.ne.s32.totalorder %v2035, 4294967196
        %vm2116 = vcmask 1046528
        %v2117 = vrot.slane %v2105, 1
        %v2118 = vrot.slane %v2111, 1
        %v2119 = vsel %vm2116, %v2117, %v2118
        %v2122 = vsub.f32 %v2069, %v2119
        %v2123 = vsub.f32 %v2070, %v2118
        %v2126 = vrot.slane %v2122, 7
        %v2127 = vrot.slane %v2123, 7
        %v2128 = vsel %vm2085, %v2126, %v2127
        %v2131 = vsel %vm2112, %v2126, 0.0
        %v2132 = vsel %vm2113, %v2128, 0.0
        %v2135 = vrot.slane %v2131, 1
        %v2136 = vrot.slane %v2132, 1
        %v2137 = vsel %vm2116, %v2135, %v2136
        %vm2140 = vcmask 7168
        %v2141 = vsel %vm2140, %v2137, 0.0
        %vm2142 = vcmask 4096
        %v2143 = vsel %vm2142, %v2136, 0.0
        %v2144 = vadd.f32 %v2141, %v2143
        %2145 = vadd.xlane.f32.xlu0 %v2144
        %v2146 = vpop.xlane.xlu0 %2145
        %v2147 = vrot.slane %v2146, 4
        %v2148 = vadd.f32 %v2146, %v2147
        %v2149 = vrot.slane %v2148, 2
        %v2150 = vadd.f32 %v2148, %v2149
        %v2151 = vrot.slane %v2150, 1
        %v2152 = vadd.f32 %v2150, %v2151
        %s2153 = vtos %v2152
        %v2154 = vsel %vm2112, 1, 0
        %v2155 = vsel %vm2113, 1, 0
        %v2156 = vcvt.s32.f32 %v2154
        %v2157 = vcvt.s32.f32 %v2155
        %v2160 = vrot.slane %v2156, 1
        %v2161 = vrot.slane %v2157, 1
        %v2162 = vsel %vm2116, %v2160, %v2161
        %v2165 = vsel %vm2140, %v2162, 0.0
        %v2166 = vsel %vm2142, %v2161, 0.0
        %v2167 = vadd.f32 %v2165, %v2166
        %2168 = vadd.xlane.f32.xlu0 %v2167
        %v2169 = vpop.xlane.xlu0 %2168
        %v2170 = vrot.slane %v2169, 4
        %v2171 = vadd.f32 %v2169, %v2170
        %v2172 = vrot.slane %v2171, 2
        %v2173 = vadd.f32 %v2171, %v2172
        %v2174 = vrot.slane %v2173, 1
        %v2175 = vadd.f32 %v2173, %v2174
        %s2176 = vtos %v2175
        %vm2177 = vcmp.eq.s32.totalorder %v655, 0
        %vm2178 = vcmp.eq.s32.totalorder %v655, 1
        %v2179 = vstv %s2176
        %v2180 = vsel %vm2178, %v2179, 0.0
        %v2181 = vstv %s2153
        %v2182 = vsel %vm2177, %v2181, %v2180
        %2183 = vst [vmem:[%s230] sm:$0xff] %v2182
        %p2184 = scmp.lt.s32.totalorder %s16, 1
        %s2185 = scalar_select %p2184, %s16, 1
        %s2186 = smul.addr %s2185, 8
        %s2187 = scalar_lea.vmem %s4, %s2186
        // Predicated region
        $region41: #{soft_prompt_image_caption_forward.1} parent=35 // pred_check
          %p2188 = pneg %p128
        $region42: #{soft_prompt_image_caption_forward.1} parent=35 // pred_check_branch
          %2190 = sbr.rel (%p2188) target = $region44
        $region43: #{soft_prompt_image_caption_forward.1} parent=35 // pred_region
          _
        $region44: #{soft_prompt_image_caption_forward.1} parent=35 // pred_fallthru
          _
      $region36: #{soft_prompt_image_caption_forward.1} parent=5 // pred_fallthru
        _
      %p2191 = scmp.le.s32.totalorder 2, %s11
      // Predicated region
      $region45: #{soft_prompt_image_caption_forward.1} parent=5 // pred_check
        %p2192 = pneg %p2191
      $region46: #{soft_prompt_image_caption_forward.1} parent=5 // pred_check_branch
        %2194 = sbr.rel (%p2192) target = $region48
      $region47: #{soft_prompt_image_caption_forward.1} parent=5 // pred_region
        %s2195 = ssub.s32 %s11, 2
        // Predicated region
        $region49: #{soft_prompt_image_caption_forward.1} parent=47 // pred_check
          %p2196 = pneg %p134
        $region50: #{soft_prompt_image_caption_forward.1} parent=47 // pred_check_branch
          %2198 = sbr.rel (%p2196) target = $region52
        $region51: #{soft_prompt_image_caption_forward.1} parent=47 // pred_region
          %p2199 = scmp.lt.s32.totalorder %s17, 1
          %s2200 = scalar_select %p2199, %s17, 1
          %s2201 = smul.addr %s2200, 8
          %s2202 = scalar_lea.vmem %s4, %s2201
        $region52: #{soft_prompt_image_caption_forward.1} parent=47 // pred_fallthru
          _
      $region48: #{soft_prompt_image_caption_forward.1} parent=5 // pred_fallthru
        _
    $region6: #{soft_prompt_image_caption_forward.1} parent=1 // loop_footer
      %s15 = sadd.s32 1, %s11
    $region7: #{soft_prompt_image_caption_forward.1} parent=1 // loop_footer_branch
      %10 = sbr.rel target = $region3
    $region8: #{soft_prompt_image_caption_forward.1} parent=1 // loop_exit
      _
    %2203 = vsyncpa [#allocation4], 1
    %s2204 = scalar_lea.sflag [#allocation4], 1
    %2205 = vsyncpa %s2204, 1

</llo_original>
